<compile_context>
chip_gen: v5e
topology: v5e:2x2
jax: 0.10.0
libtpu: 0.0.40
codegen_flags: <defaults>
</compile_context>

<pallas_src>
import functools

import jax
import jax.numpy as jnp
from jax import lax
from jax.experimental import pallas as pl
from jax.experimental.pallas import tpu as pltpu

_VMEM_LIMIT = 64 * 1024 * 1024  # explicit scoped-VMEM budget (fits v7x's 64 MiB)


def _pick_tile_h(h):
    """Largest H-tile (multiple of 8) that divides H; fall back to full H."""
    for th in (512, 256, 128, 64, 32, 16, 8):
        if h % th == 0:
            return th
    return h


# ---------------------------------------------------------------------------
# Kernel 1: robust-normalization statistics, tiled over (B, H-tiles).
# ---------------------------------------------------------------------------
def _stats_kernel(med_p_ref, med_t_ref,            # SMEM (B,) medians
                  pred_ref, tgt_ref, mask_ref,     # VMEM (1, TH, W) tiles
                  ssum_ref, sqp_ref, sqt_ref):     # VMEM (1, 1, 1) accumulators
    b = pl.program_id(0)

    @pl.when(pl.program_id(1) == 0)
    def _init():
        ssum_ref[...] = jnp.zeros_like(ssum_ref)
        sqp_ref[...] = jnp.zeros_like(sqp_ref)
        sqt_ref[...] = jnp.zeros_like(sqt_ref)

    mask = mask_ref[...]
    ssum_ref[...] += jnp.sum(mask, axis=(1, 2), keepdims=True)
    sqp_ref[...] += jnp.sum(mask * jnp.abs(pred_ref[...] - med_p_ref[b]),
                            axis=(1, 2), keepdims=True)
    sqt_ref[...] += jnp.sum(mask * jnp.abs(tgt_ref[...] - med_t_ref[b]),
                            axis=(1, 2), keepdims=True)


def _run_stats(pred, tgt, msk, med_p, med_t):
    B, H, W = pred.shape
    th = _pick_tile_h(H)
    smem = pl.BlockSpec(memory_space=pltpu.MemorySpace.SMEM)
    img = pl.BlockSpec((1, th, W), lambda b, h: (b, h, 0))
    acc = pl.BlockSpec((1, 1, 1), lambda b, h: (b, 0, 0))
    out = jax.ShapeDtypeStruct((B, 1, 1), jnp.float32)
    return pl.pallas_call(
        _stats_kernel,
        grid=(B, H // th),
        in_specs=[smem, smem, img, img, img],
        out_specs=(acc, acc, acc),
        out_shape=(out, out, out),
        compiler_params=pltpu.CompilerParams(
            dimension_semantics=("parallel", "arbitrary"),
            vmem_limit_bytes=_VMEM_LIMIT),
    )(med_p, med_t, pred, tgt, msk)


# ---------------------------------------------------------------------------
# Kernel 2: fused normalization + weighted MAE + multi-scale gradient loss.
# ---------------------------------------------------------------------------
def _shift0(x, k, axis):
    """y[..., i, ...] = x[..., i+k, ...] if i+k < n else 0 (zero-filled shift)."""
    n = x.shape[axis]
    if k == 0:
        return x
    if k >= n:
        return jnp.zeros_like(x)
    sl = [slice(None)] * x.ndim
    sl[axis] = slice(k, None)
    pad_shape = list(x.shape)
    pad_shape[axis] = k
    return jnp.concatenate([x[tuple(sl)], jnp.zeros(pad_shape, x.dtype)], axis=axis)


def _make_fused_kernel(scales):
    def kernel(mp_ref, isp_ref, mt_ref, ist_ref,          # SMEM (B,) scalars
               pred_ref, tgt_ref, mask_ref, wgt_ref,      # VMEM (1, H, W)
               dsum_ref, *scale_refs):                    # VMEM (1, 1, 1) each
        b = pl.program_id(0)
        _, H, W = pred_ref.shape

        mask = mask_ref[...]
        # Hoisted per-sample normalization: scalar shift + reciprocal multiply.
        p_ssi = (pred_ref[...] - mp_ref[b]) * isp_ref[b]
        t_ssi = (tgt_ref[...] - mt_ref[b]) * ist_ref[b]

        e = p_ssi - t_ssi
        # Weighted MAE partial sum (data term).
        dsum_ref[...] = jnp.sum(jnp.abs(e) * wgt_ref[...] * mask,
                                axis=(1, 2), keepdims=True)

        if scales == 0:
            return

        d = mask * e  # masked difference shared by every gradient scale
        if scales > 1:
            row = lax.broadcasted_iota(jnp.int32, (1, H, W), 1)
            col = lax.broadcasted_iota(jnp.int32, (1, H, W), 2)

        gsum_refs = scale_refs[:scales]
        msum_refs = scale_refs[scales:]
        for s in range(scales):
            step = 1 << s
            # Shifted differences on full lane-dense extents; the zero-filled
            # shifted mask removes out-of-range neighbor pairs automatically.
            gx = jnp.abs(_shift0(d, step, 2) - d) * (_shift0(mask, step, 2) * mask)
            gy = jnp.abs(_shift0(d, step, 1) - d) * (_shift0(mask, step, 1) * mask)
            if step == 1:
                g = gx + gy
                m_s = mask
            else:
                # In-kernel decimation: keep only rows/cols on the stride grid.
                on_grid = jnp.logical_and((row & (step - 1)) == 0,
                                          (col & (step - 1)) == 0)
                g = jnp.where(on_grid, gx + gy, 0.0)
                m_s = jnp.where(on_grid, mask, 0.0)
            gsum_refs[s][...] = jnp.sum(g, axis=(1, 2), keepdims=True)
            msum_refs[s][...] = jnp.sum(m_s, axis=(1, 2), keepdims=True)

    return kernel


def _run_fused(pred, tgt, msk, wgt, m_p, inv_s_p, m_t, inv_s_t, scales):
    B, H, W = pred.shape
    smem = pl.BlockSpec(memory_space=pltpu.MemorySpace.SMEM)
    img = pl.BlockSpec((1, H, W), lambda b: (b, 0, 0))
    out = pl.BlockSpec((1, 1, 1), lambda b: (b, 0, 0))
    n_out = 1 + 2 * scales
    sds = jax.ShapeDtypeStruct((B, 1, 1), jnp.float32)
    return pl.pallas_call(
        _make_fused_kernel(scales),
        grid=(B,),
        in_specs=[smem] * 4 + [img] * 4,
        out_specs=(out,) * n_out,
        out_shape=(sds,) * n_out,
        compiler_params=pltpu.CompilerParams(
            dimension_semantics=("parallel",),
            vmem_limit_bytes=_VMEM_LIMIT),
    )(m_p, inv_s_p, m_t, inv_s_t, pred, tgt, msk, wgt)


# ---------------------------------------------------------------------------
# Forward pass wrapper (matches WeightedAffineLoss.forward).
# ---------------------------------------------------------------------------
def weighted_affine_loss(prediction, target, mask, weight=None, alpha=0.5, scales=4):
    pred = prediction.astype(jnp.float32)
    tgt = target.astype(jnp.float32)
    msk = mask.astype(jnp.float32)
    B, H, W = pred.shape
    if weight is None:
        weight = jnp.ones_like(msk)
    wgt = weight.astype(jnp.float32)

    # ---- robust normalization: per-sample lower median of mask * x ----
    # TODO(synk): torch.median (lower median) has no Pallas sort/selection
    # primitive; computed with jnp.sort in plain JAX glue.
    n = H * W
    mid = (n - 1) // 2  # torch.median returns the lower of the two middle values
    med_p = jnp.sort((msk * pred).reshape(B, n), axis=1)[:, mid]
    med_t = jnp.sort((msk * tgt).reshape(B, n), axis=1)[:, mid]

    ssum, sq_p, sq_t = _run_stats(pred, tgt, msk, med_p, med_t)
    ssum = ssum.reshape(B)
    sq_p = sq_p.reshape(B)
    sq_t = sq_t.reshape(B)

    valid = ssum > 0.0
    any_valid = jnp.any(valid)
    safe_ssum = jnp.where(valid, ssum, 1.0)
    m_p = jnp.where(valid, med_p, 0.0)
    m_t = jnp.where(valid, med_t, 0.0)
    s_p = jnp.where(valid, jnp.maximum(sq_p / safe_ssum, 1e-6), 1.0)
    s_t = jnp.where(valid, jnp.maximum(sq_t / safe_ssum, 1e-6), 1.0)
    inv_s_p = 1.0 / s_p
    inv_s_t = 1.0 / s_t

    n_scales = scales if alpha > 0 else 0
    outs = _run_fused(pred, tgt, msk, wgt, m_p, inv_s_p, m_t, inv_s_t, n_scales)

    total = jnp.sum(outs[0]) / (B * H * W)  # torch.mean over all elements

    # Multi-scale gradient regularization, 'batch-based' reduction.
    # TODO(synk): GradientLoss body is not in the reference source; the standard
    # MiDaS masked gradient loss it refers to is implemented here.
    if n_scales > 0:
        reg = jnp.float32(0.0)
        for s in range(n_scales):
            gsum = jnp.sum(outs[1 + s])
            msum = jnp.sum(outs[1 + n_scales + s])
            safe_div = jnp.where(msum == 0.0, 1.0, msum)
            reg = reg + jnp.where(msum == 0.0, 0.0, gsum / safe_div)
        total = total + alpha * reg

    # torch path: if no valid mask entries the module returns a zero tensor.
    # TODO(synk): PyTorch NaN checks raise exceptions; not representable in traced JAX.
    return jnp.where(any_valid, total, jnp.float32(0.0))


if __name__ == "__main__":
    key = jax.random.PRNGKey(0)
    k1, k2, k3, k4 = jax.random.split(key, 4)
    B, H, W = 2, 16, 16
    prediction = jax.random.normal(k1, (B, H, W), jnp.float32)
    target = jax.random.normal(k2, (B, H, W), jnp.float32)
    mask = (jax.random.uniform(k3, (B, H, W)) > 0.3).astype(jnp.float32)
    weight = jax.random.uniform(k4, (B, H, W), jnp.float32) + 0.5

    loss_fn = jax.jit(functools.partial(weighted_affine_loss, alpha=0.5, scales=4))
    loss = loss_fn(prediction, target, mask, weight)
    jax.block_until_ready(loss)
    print("KERNEL_OK")
</pallas_src>

<mosaic_0001>
module attributes {stable_mosaic.version = 11 : i64} {
  func.func @_stats_kernel(%arg0: i32, %arg1: i32, %arg2: memref<2xf32, #tpu.memory_space<smem>>, %arg3: memref<2xf32, #tpu.memory_space<smem>>, %arg4: memref<1x16x16xf32, #tpu.memory_space<vmem>>, %arg5: memref<1x16x16xf32, #tpu.memory_space<vmem>>, %arg6: memref<1x16x16xf32, #tpu.memory_space<vmem>>, %arg7: memref<1x1x1xf32, #tpu.memory_space<vmem>>, %arg8: memref<1x1x1xf32, #tpu.memory_space<vmem>>, %arg9: memref<1x1x1xf32, #tpu.memory_space<vmem>>) attributes {dimension_semantics = [#tpu.dimension_semantics<parallel>, #tpu.dimension_semantics<arbitrary>], iteration_bounds = array<i64: 2, 1>, scalar_prefetch = 0 : i64, scratch_operands = 0 : i64, tpu.core_type = #tpu.core_type<tc>, window_params = [{transform_indices = @transform_0, window_bounds = array<i64: 2>}, {transform_indices = @transform_1, window_bounds = array<i64: 2>}, {transform_indices = @transform_2, window_bounds = array<i64: 1, 16, 16>}, {transform_indices = @transform_3, window_bounds = array<i64: 1, 16, 16>}, {transform_indices = @transform_4, window_bounds = array<i64: 1, 16, 16>}, {transform_indices = @transform_5, window_bounds = array<i64: 1, 1, 1>}, {transform_indices = @transform_6, window_bounds = array<i64: 1, 1, 1>}, {transform_indices = @transform_7, window_bounds = array<i64: 1, 1, 1>}]} {
    %c0_i32 = arith.constant 0 : i32
    %0 = arith.cmpi eq, %arg1, %c0_i32 : i32
    %1 = arith.extui %0 : i1 to i32
    %c0_i32_0 = arith.constant 0 : i32
    %2 = arith.cmpi ne, %1, %c0_i32_0 : i32
    scf.if %2 {
      %cst_29 = arith.constant 0.000000e+00 : f32
      %33 = vector.broadcast %cst_29 : f32 to vector<1x1x1xf32>
      %c0_30 = arith.constant 0 : index
      %c0_31 = arith.constant 0 : index
      %c0_32 = arith.constant 0 : index
      %34 = vector.load %arg7[%c0_30, %c0_31, %c0_32] : memref<1x1x1xf32, #tpu.memory_space<vmem>>, vector<1x1x1xf32>
      tpu.vector_store %arg7[%c0_30, %c0_31, %c0_32], %33 {strides = array<i32>} : memref<1x1x1xf32, #tpu.memory_space<vmem>>, vector<1x1x1xf32>,
      %cst_33 = arith.constant 0.000000e+00 : f32
      %35 = vector.broadcast %cst_33 : f32 to vector<1x1x1xf32>
      %c0_34 = arith.constant 0 : index
      %c0_35 = arith.constant 0 : index
      %c0_36 = arith.constant 0 : index
      %36 = vector.load %arg8[%c0_34, %c0_35, %c0_36] : memref<1x1x1xf32, #tpu.memory_space<vmem>>, vector<1x1x1xf32>
      tpu.vector_store %arg8[%c0_34, %c0_35, %c0_36], %35 {strides = array<i32>} : memref<1x1x1xf32, #tpu.memory_space<vmem>>, vector<1x1x1xf32>,
      %cst_37 = arith.constant 0.000000e+00 : f32
      %37 = vector.broadcast %cst_37 : f32 to vector<1x1x1xf32>
      %c0_38 = arith.constant 0 : index
      %c0_39 = arith.constant 0 : index
      %c0_40 = arith.constant 0 : index
      %38 = vector.load %arg9[%c0_38, %c0_39, %c0_40] : memref<1x1x1xf32, #tpu.memory_space<vmem>>, vector<1x1x1xf32>
      tpu.vector_store %arg9[%c0_38, %c0_39, %c0_40], %37 {strides = array<i32>} : memref<1x1x1xf32, #tpu.memory_space<vmem>>, vector<1x1x1xf32>,
    } else {
    }
    %c0 = arith.constant 0 : index
    %c0_1 = arith.constant 0 : index
    %c0_2 = arith.constant 0 : index
    %3 = vector.load %arg6[%c0, %c0_1, %c0_2] : memref<1x16x16xf32, #tpu.memory_space<vmem>>, vector<1x16x16xf32>
    %c0_3 = arith.constant 0 : index
    %c0_4 = arith.constant 0 : index
    %c0_5 = arith.constant 0 : index
    %4 = vector.load %arg7[%c0_3, %c0_4, %c0_5] : memref<1x1x1xf32, #tpu.memory_space<vmem>>, vector<1x1x1xf32>
    %cst = arith.constant dense<0.000000e+00> : vector<1xf32>
    %5 = vector.multi_reduction <add>, %3, %cst [1, 2] : vector<1x16x16xf32> to vector<1xf32>
    %6 = vector.shape_cast %5 : vector<1xf32> to vector<1x1x1xf32>
    %7 = arith.addf %4, %6 : vector<1x1x1xf32>
    %c0_6 = arith.constant 0 : index
    %c0_7 = arith.constant 0 : index
    %c0_8 = arith.constant 0 : index
    %8 = vector.load %arg7[%c0_6, %c0_7, %c0_8] : memref<1x1x1xf32, #tpu.memory_space<vmem>>, vector<1x1x1xf32>
    tpu.vector_store %arg7[%c0_6, %c0_7, %c0_8], %7 {strides = array<i32>} : memref<1x1x1xf32, #tpu.memory_space<vmem>>, vector<1x1x1xf32>,
    %c0_9 = arith.constant 0 : index
    %c0_10 = arith.constant 0 : index
    %c0_11 = arith.constant 0 : index
    %9 = vector.load %arg8[%c0_9, %c0_10, %c0_11] : memref<1x1x1xf32, #tpu.memory_space<vmem>>, vector<1x1x1xf32>
    %c0_12 = arith.constant 0 : index
    %c0_13 = arith.constant 0 : index
    %c0_14 = arith.constant 0 : index
    %10 = vector.load %arg4[%c0_12, %c0_13, %c0_14] : memref<1x16x16xf32, #tpu.memory_space<vmem>>, vector<1x16x16xf32>
    %11 = arith.index_cast %arg0 : i32 to index
    %12 = memref.load %arg2[%11] : memref<2xf32, #tpu.memory_space<smem>>
    %13 = vector.broadcast %12 : f32 to vector<1x16x16xf32>
    %14 = arith.subf %10, %13 : vector<1x16x16xf32>
    %15 = math.absf %14 : vector<1x16x16xf32>
    %16 = arith.mulf %3, %15 : vector<1x16x16xf32>
    %cst_15 = arith.constant dense<0.000000e+00> : vector<1xf32>
    %17 = vector.multi_reduction <add>, %16, %cst_15 [1, 2] : vector<1x16x16xf32> to vector<1xf32>
    %18 = vector.shape_cast %17 : vector<1xf32> to vector<1x1x1xf32>
    %19 = arith.addf %9, %18 : vector<1x1x1xf32>
    %c0_16 = arith.constant 0 : index
    %c0_17 = arith.constant 0 : index
    %c0_18 = arith.constant 0 : index
    %20 = vector.load %arg8[%c0_16, %c0_17, %c0_18] : memref<1x1x1xf32, #tpu.memory_space<vmem>>, vector<1x1x1xf32>
    tpu.vector_store %arg8[%c0_16, %c0_17, %c0_18], %19 {strides = array<i32>} : memref<1x1x1xf32, #tpu.memory_space<vmem>>, vector<1x1x1xf32>,
    %c0_19 = arith.constant 0 : index
    %c0_20 = arith.constant 0 : index
    %c0_21 = arith.constant 0 : index
    %21 = vector.load %arg9[%c0_19, %c0_20, %c0_21] : memref<1x1x1xf32, #tpu.memory_space<vmem>>, vector<1x1x1xf32>
    %c0_22 = arith.constant 0 : index
    %c0_23 = arith.constant 0 : index
    %c0_24 = arith.constant 0 : index
    %22 = vector.load %arg5[%c0_22, %c0_23, %c0_24] : memref<1x16x16xf32, #tpu.memory_space<vmem>>, vector<1x16x16xf32>
    %23 = arith.index_cast %arg0 : i32 to index
    %24 = memref.load %arg3[%23] : memref<2xf32, #tpu.memory_space<smem>>
    %25 = vector.broadcast %24 : f32 to vector<1x16x16xf32>
    %26 = arith.subf %22, %25 : vector<1x16x16xf32>
    %27 = math.absf %26 : vector<1x16x16xf32>
    %28 = arith.mulf %3, %27 : vector<1x16x16xf32>
    %cst_25 = arith.constant dense<0.000000e+00> : vector<1xf32>
    %29 = vector.multi_reduction <add>, %28, %cst_25 [1, 2] : vector<1x16x16xf32> to vector<1xf32>
    %30 = vector.shape_cast %29 : vector<1xf32> to vector<1x1x1xf32>
    %31 = arith.addf %21, %30 : vector<1x1x1xf32>
    %c0_26 = arith.constant 0 : index
    %c0_27 = arith.constant 0 : index
    %c0_28 = arith.constant 0 : index
    %32 = vector.load %arg9[%c0_26, %c0_27, %c0_28] : memref<1x1x1xf32, #tpu.memory_space<vmem>>, vector<1x1x1xf32>
    tpu.vector_store %arg9[%c0_26, %c0_27, %c0_28], %31 {strides = array<i32>} : memref<1x1x1xf32, #tpu.memory_space<vmem>>, vector<1x1x1xf32>,
    return
  }
  func.func @transform_0(%arg0: i32, %arg1: i32) -> i32 {
    %c0_i32 = arith.constant 0 : i32
    %c0_i32_0 = arith.constant 0 : i32
    return %c0_i32 : i32
  }
  func.func @transform_1(%arg0: i32, %arg1: i32) -> i32 {
    %c0_i32 = arith.constant 0 : i32
    %c0_i32_0 = arith.constant 0 : i32
    return %c0_i32 : i32
  }
  func.func @transform_2(%arg0: i32, %arg1: i32) -> (i32, i32, i32) {
    %c0_i32 = arith.constant 0 : i32
    %c0_i32_0 = arith.constant 0 : i32
    return %arg0, %arg1, %c0_i32 : i32, i32, i32
  }
  func.func @transform_3(%arg0: i32, %arg1: i32) -> (i32, i32, i32) {
    %c0_i32 = arith.constant 0 : i32
    %c0_i32_0 = arith.constant 0 : i32
    return %arg0, %arg1, %c0_i32 : i32, i32, i32
  }
  func.func @transform_4(%arg0: i32, %arg1: i32) -> (i32, i32, i32) {
    %c0_i32 = arith.constant 0 : i32
    %c0_i32_0 = arith.constant 0 : i32
    return %arg0, %arg1, %c0_i32 : i32, i32, i32
  }
  func.func @transform_5(%arg0: i32, %arg1: i32) -> (i32, i32, i32) {
    %c0_i32 = arith.constant 0 : i32
    %c0_i32_0 = arith.constant 0 : i32
    %c0_i32_1 = arith.constant 0 : i32
    return %arg0, %c0_i32, %c0_i32_0 : i32, i32, i32
  }
  func.func @transform_6(%arg0: i32, %arg1: i32) -> (i32, i32, i32) {
    %c0_i32 = arith.constant 0 : i32
    %c0_i32_0 = arith.constant 0 : i32
    %c0_i32_1 = arith.constant 0 : i32
    return %arg0, %c0_i32, %c0_i32_0 : i32, i32, i32
  }
  func.func @transform_7(%arg0: i32, %arg1: i32) -> (i32, i32, i32) {
    %c0_i32 = arith.constant 0 : i32
    %c0_i32_0 = arith.constant 0 : i32
    %c0_i32_1 = arith.constant 0 : i32
    return %arg0, %c0_i32, %c0_i32_0 : i32, i32, i32
  }
}

module attributes {stable_mosaic.version = 11 : i64} {
  func.func @kernel(%arg0: i32, %arg1: memref<2xf32, #tpu.memory_space<smem>>, %arg2: memref<2xf32, #tpu.memory_space<smem>>, %arg3: memref<2xf32, #tpu.memory_space<smem>>, %arg4: memref<2xf32, #tpu.memory_space<smem>>, %arg5: memref<1x16x16xf32, #tpu.memory_space<vmem>>, %arg6: memref<1x16x16xf32, #tpu.memory_space<vmem>>, %arg7: memref<1x16x16xf32, #tpu.memory_space<vmem>>, %arg8: memref<1x16x16xf32, #tpu.memory_space<vmem>>, %arg9: memref<1x1x1xf32, #tpu.memory_space<vmem>>, %arg10: memref<1x1x1xf32, #tpu.memory_space<vmem>>, %arg11: memref<1x1x1xf32, #tpu.memory_space<vmem>>, %arg12: memref<1x1x1xf32, #tpu.memory_space<vmem>>, %arg13: memref<1x1x1xf32, #tpu.memory_space<vmem>>, %arg14: memref<1x1x1xf32, #tpu.memory_space<vmem>>, %arg15: memref<1x1x1xf32, #tpu.memory_space<vmem>>, %arg16: memref<1x1x1xf32, #tpu.memory_space<vmem>>, %arg17: memref<1x1x1xf32, #tpu.memory_space<vmem>>) attributes {dimension_semantics = [#tpu.dimension_semantics<parallel>], iteration_bounds = array<i64: 2>, scalar_prefetch = 0 : i64, scratch_operands = 0 : i64, tpu.core_type = #tpu.core_type<tc>, window_params = [{transform_indices = @transform_0, window_bounds = array<i64: 2>}, {transform_indices = @transform_1, window_bounds = array<i64: 2>}, {transform_indices = @transform_2, window_bounds = array<i64: 2>}, {transform_indices = @transform_3, window_bounds = array<i64: 2>}, {transform_indices = @transform_4, window_bounds = array<i64: 1, 16, 16>}, {transform_indices = @transform_5, window_bounds = array<i64: 1, 16, 16>}, {transform_indices = @transform_6, window_bounds = array<i64: 1, 16, 16>}, {transform_indices = @transform_7, window_bounds = array<i64: 1, 16, 16>}, {transform_indices = @transform_8, window_bounds = array<i64: 1, 1, 1>}, {transform_indices = @transform_9, window_bounds = array<i64: 1, 1, 1>}, {transform_indices = @transform_10, window_bounds = array<i64: 1, 1, 1>}, {transform_indices = @transform_11, window_bounds = array<i64: 1, 1, 1>}, {transform_indices = @transform_12, window_bounds = array<i64: 1, 1, 1>}, {transform_indices = @transform_13, window_bounds = array<i64: 1, 1, 1>}, {transform_indices = @transform_14, window_bounds = array<i64: 1, 1, 1>}, {transform_indices = @transform_15, window_bounds = array<i64: 1, 1, 1>}, {transform_indices = @transform_16, window_bounds = array<i64: 1, 1, 1>}]} {
    %c0 = arith.constant 0 : index
    %c0_0 = arith.constant 0 : index
    %c0_1 = arith.constant 0 : index
    %0 = vector.load %arg7[%c0, %c0_0, %c0_1] : memref<1x16x16xf32, #tpu.memory_space<vmem>>, vector<1x16x16xf32>
    %c0_2 = arith.constant 0 : index
    %c0_3 = arith.constant 0 : index
    %c0_4 = arith.constant 0 : index
    %1 = vector.load %arg5[%c0_2, %c0_3, %c0_4] : memref<1x16x16xf32, #tpu.memory_space<vmem>>, vector<1x16x16xf32>
    %2 = arith.index_cast %arg0 : i32 to index
    %3 = memref.load %arg1[%2] : memref<2xf32, #tpu.memory_space<smem>>
    %4 = vector.broadcast %3 : f32 to vector<1x16x16xf32>
    %5 = arith.subf %1, %4 : vector<1x16x16xf32>
    %6 = arith.index_cast %arg0 : i32 to index
    %7 = memref.load %arg2[%6] : memref<2xf32, #tpu.memory_space<smem>>
    %8 = vector.broadcast %7 : f32 to vector<1x16x16xf32>
    %9 = arith.mulf %5, %8 : vector<1x16x16xf32>
    %c0_5 = arith.constant 0 : index
    %c0_6 = arith.constant 0 : index
    %c0_7 = arith.constant 0 : index
    %10 = vector.load %arg6[%c0_5, %c0_6, %c0_7] : memref<1x16x16xf32, #tpu.memory_space<vmem>>, vector<1x16x16xf32>
    %11 = arith.index_cast %arg0 : i32 to index
    %12 = memref.load %arg3[%11] : memref<2xf32, #tpu.memory_space<smem>>
    %13 = vector.broadcast %12 : f32 to vector<1x16x16xf32>
    %14 = arith.subf %10, %13 : vector<1x16x16xf32>
    %15 = arith.index_cast %arg0 : i32 to index
    %16 = memref.load %arg4[%15] : memref<2xf32, #tpu.memory_space<smem>>
    %17 = vector.broadcast %16 : f32 to vector<1x16x16xf32>
    %18 = arith.mulf %14, %17 : vector<1x16x16xf32>
    %19 = arith.subf %9, %18 : vector<1x16x16xf32>
    %20 = math.absf %19 : vector<1x16x16xf32>
    %c0_8 = arith.constant 0 : index
    %c0_9 = arith.constant 0 : index
    %c0_10 = arith.constant 0 : index
    %21 = vector.load %arg8[%c0_8, %c0_9, %c0_10] : memref<1x16x16xf32, #tpu.memory_space<vmem>>, vector<1x16x16xf32>
    %22 = arith.mulf %20, %21 : vector<1x16x16xf32>
    %23 = arith.mulf %22, %0 : vector<1x16x16xf32>
    %cst = arith.constant dense<0.000000e+00> : vector<1xf32>
    %24 = vector.multi_reduction <add>, %23, %cst [1, 2] : vector<1x16x16xf32> to vector<1xf32>
    %25 = vector.shape_cast %24 : vector<1xf32> to vector<1x1x1xf32>
    %c0_11 = arith.constant 0 : index
    %c0_12 = arith.constant 0 : index
    %c0_13 = arith.constant 0 : index
    %26 = vector.load %arg9[%c0_11, %c0_12, %c0_13] : memref<1x1x1xf32, #tpu.memory_space<vmem>>, vector<1x1x1xf32>
    tpu.vector_store %arg9[%c0_11, %c0_12, %c0_13], %25 {strides = array<i32>} : memref<1x1x1xf32, #tpu.memory_space<vmem>>, vector<1x1x1xf32>,
    %27 = arith.mulf %0, %19 : vector<1x16x16xf32>
    %28 = tpu.iota {dimensions = array<i32: 1>} : vector<1x16x16xi32>
    %29 = tpu.iota {dimensions = array<i32: 2>} : vector<1x16x16xi32>
    %30 = vector.extract_strided_slice %27 {offsets = [0, 0, 1], sizes = [1, 16, 15], strides = [1, 1, 1]} : vector<1x16x16xf32> to vector<1x16x15xf32>
    %cst_14 = arith.constant 0.000000e+00 : f32
    %31 = vector.broadcast %cst_14 : f32 to vector<1x16x1xf32>
    %32 = tpu.concatenate %30, %31 in 2 : vector<1x16x15xf32>, vector<1x16x1xf32> -> vector<1x16x16xf32>
    %33 = arith.subf %32, %27 : vector<1x16x16xf32>
    %34 = math.absf %33 : vector<1x16x16xf32>
    %35 = vector.extract_strided_slice %0 {offsets = [0, 0, 1], sizes = [1, 16, 15], strides = [1, 1, 1]} : vector<1x16x16xf32> to vector<1x16x15xf32>
    %cst_15 = arith.constant 0.000000e+00 : f32
    %36 = vector.broadcast %cst_15 : f32 to vector<1x16x1xf32>
    %37 = tpu.concatenate %35, %36 in 2 : vector<1x16x15xf32>, vector<1x16x1xf32> -> vector<1x16x16xf32>
    %38 = arith.mulf %37, %0 : vector<1x16x16xf32>
    %39 = arith.mulf %34, %38 : vector<1x16x16xf32>
    %40 = vector.extract_strided_slice %27 {offsets = [0, 1, 0], sizes = [1, 15, 16], strides = [1, 1, 1]} : vector<1x16x16xf32> to vector<1x15x16xf32>
    %cst_16 = arith.constant 0.000000e+00 : f32
    %41 = vector.broadcast %cst_16 : f32 to vector<1x1x16xf32>
    %42 = tpu.concatenate %40, %41 in 1 : vector<1x15x16xf32>, vector<1x1x16xf32> -> vector<1x16x16xf32>
    %43 = arith.subf %42, %27 : vector<1x16x16xf32>
    %44 = math.absf %43 : vector<1x16x16xf32>
    %45 = vector.extract_strided_slice %0 {offsets = [0, 1, 0], sizes = [1, 15, 16], strides = [1, 1, 1]} : vector<1x16x16xf32> to vector<1x15x16xf32>
    %cst_17 = arith.constant 0.000000e+00 : f32
    %46 = vector.broadcast %cst_17 : f32 to vector<1x1x16xf32>
    %47 = tpu.concatenate %45, %46 in 1 : vector<1x15x16xf32>, vector<1x1x16xf32> -> vector<1x16x16xf32>
    %48 = arith.mulf %47, %0 : vector<1x16x16xf32>
    %49 = arith.mulf %44, %48 : vector<1x16x16xf32>
    %50 = arith.addf %39, %49 : vector<1x16x16xf32>
    %cst_18 = arith.constant dense<0.000000e+00> : vector<1xf32>
    %51 = vector.multi_reduction <add>, %50, %cst_18 [1, 2] : vector<1x16x16xf32> to vector<1xf32>
    %52 = vector.shape_cast %51 : vector<1xf32> to vector<1x1x1xf32>
    %c0_19 = arith.constant 0 : index
    %c0_20 = arith.constant 0 : index
    %c0_21 = arith.constant 0 : index
    %53 = vector.load %arg10[%c0_19, %c0_20, %c0_21] : memref<1x1x1xf32, #tpu.memory_space<vmem>>, vector<1x1x1xf32>
    tpu.vector_store %arg10[%c0_19, %c0_20, %c0_21], %52 {strides = array<i32>} : memref<1x1x1xf32, #tpu.memory_space<vmem>>, vector<1x1x1xf32>,
    %cst_22 = arith.constant dense<0.000000e+00> : vector<1xf32>
    %54 = vector.multi_reduction <add>, %0, %cst_22 [1, 2] : vector<1x16x16xf32> to vector<1xf32>
    %55 = vector.shape_cast %54 : vector<1xf32> to vector<1x1x1xf32>
    %c0_23 = arith.constant 0 : index
    %c0_24 = arith.constant 0 : index
    %c0_25 = arith.constant 0 : index
    %56 = vector.load %arg14[%c0_23, %c0_24, %c0_25] : memref<1x1x1xf32, #tpu.memory_space<vmem>>, vector<1x1x1xf32>
    tpu.vector_store %arg14[%c0_23, %c0_24, %c0_25], %55 {strides = array<i32>} : memref<1x1x1xf32, #tpu.memory_space<vmem>>, vector<1x1x1xf32>,
    %57 = vector.extract_strided_slice %27 {offsets = [0, 0, 2], sizes = [1, 16, 14], strides = [1, 1, 1]} : vector<1x16x16xf32> to vector<1x16x14xf32>
    %cst_26 = arith.constant 0.000000e+00 : f32
    %58 = vector.broadcast %cst_26 : f32 to vector<1x16x2xf32>
    %59 = tpu.concatenate %57, %58 in 2 : vector<1x16x14xf32>, vector<1x16x2xf32> -> vector<1x16x16xf32>
    %60 = arith.subf %59, %27 : vector<1x16x16xf32>
    %61 = math.absf %60 : vector<1x16x16xf32>
    %62 = vector.extract_strided_slice %0 {offsets = [0, 0, 2], sizes = [1, 16, 14], strides = [1, 1, 1]} : vector<1x16x16xf32> to vector<1x16x14xf32>
    %cst_27 = arith.constant 0.000000e+00 : f32
    %63 = vector.broadcast %cst_27 : f32 to vector<1x16x2xf32>
    %64 = tpu.concatenate %62, %63 in 2 : vector<1x16x14xf32>, vector<1x16x2xf32> -> vector<1x16x16xf32>
    %65 = arith.mulf %64, %0 : vector<1x16x16xf32>
    %66 = arith.mulf %61, %65 : vector<1x16x16xf32>
    %67 = vector.extract_strided_slice %27 {offsets = [0, 2, 0], sizes = [1, 14, 16], strides = [1, 1, 1]} : vector<1x16x16xf32> to vector<1x14x16xf32>
    %cst_28 = arith.constant 0.000000e+00 : f32
    %68 = vector.broadcast %cst_28 : f32 to vector<1x2x16xf32>
    %69 = tpu.concatenate %67, %68 in 1 : vector<1x14x16xf32>, vector<1x2x16xf32> -> vector<1x16x16xf32>
    %70 = arith.subf %69, %27 : vector<1x16x16xf32>
    %71 = math.absf %70 : vector<1x16x16xf32>
    %72 = vector.extract_strided_slice %0 {offsets = [0, 2, 0], sizes = [1, 14, 16], strides = [1, 1, 1]} : vector<1x16x16xf32> to vector<1x14x16xf32>
    %cst_29 = arith.constant 0.000000e+00 : f32
    %73 = vector.broadcast %cst_29 : f32 to vector<1x2x16xf32>
    %74 = tpu.concatenate %72, %73 in 1 : vector<1x14x16xf32>, vector<1x2x16xf32> -> vector<1x16x16xf32>
    %75 = arith.mulf %74, %0 : vector<1x16x16xf32>
    %76 = arith.mulf %71, %75 : vector<1x16x16xf32>
    %c1_i32 = arith.constant 1 : i32
    %77 = vector.broadcast %c1_i32 : i32 to vector<1x16x16xi32>
    %78 = arith.andi %28, %77 : vector<1x16x16xi32>
    %c0_i32 = arith.constant 0 : i32
    %79 = vector.broadcast %c0_i32 : i32 to vector<1x16x16xi32>
    %80 = arith.cmpi eq, %78, %79 : vector<1x16x16xi32>
    %c1_i32_30 = arith.constant 1 : i32
    %81 = vector.broadcast %c1_i32_30 : i32 to vector<1x16x16xi32>
    %82 = arith.andi %29, %81 : vector<1x16x16xi32>
    %c0_i32_31 = arith.constant 0 : i32
    %83 = vector.broadcast %c0_i32_31 : i32 to vector<1x16x16xi32>
    %84 = arith.cmpi eq, %82, %83 : vector<1x16x16xi32>
    %85 = arith.andi %80, %84 : vector<1x16x16xi1>
    %86 = arith.addf %66, %76 : vector<1x16x16xf32>
    %cst_32 = arith.constant 0.000000e+00 : f32
    %87 = vector.broadcast %cst_32 : f32 to vector<1x16x16xf32>
    %88 = arith.select %85, %86, %87 : vector<1x16x16xi1>, vector<1x16x16xf32>
    %cst_33 = arith.constant 0.000000e+00 : f32
    %89 = vector.broadcast %cst_33 : f32 to vector<1x16x16xf32>
    %90 = arith.select %85, %0, %89 : vector<1x16x16xi1>, vector<1x16x16xf32>
    %cst_34 = arith.constant dense<0.000000e+00> : vector<1xf32>
    %91 = vector.multi_reduction <add>, %88, %cst_34 [1, 2] : vector<1x16x16xf32> to vector<1xf32>
    %92 = vector.shape_cast %91 : vector<1xf32> to vector<1x1x1xf32>
    %c0_35 = arith.constant 0 : index
    %c0_36 = arith.constant 0 : index
    %c0_37 = arith.constant 0 : index
    %93 = vector.load %arg11[%c0_35, %c0_36, %c0_37] : memref<1x1x1xf32, #tpu.memory_space<vmem>>, vector<1x1x1xf32>
    tpu.vector_store %arg11[%c0_35, %c0_36, %c0_37], %92 {strides = array<i32>} : memref<1x1x1xf32, #tpu.memory_space<vmem>>, vector<1x1x1xf32>,
    %cst_38 = arith.constant dense<0.000000e+00> : vector<1xf32>
    %94 = vector.multi_reduction <add>, %90, %cst_38 [1, 2] : vector<1x16x16xf32> to vector<1xf32>
    %95 = vector.shape_cast %94 : vector<1xf32> to vector<1x1x1xf32>
    %c0_39 = arith.constant 0 : index
    %c0_40 = arith.constant 0 : index
    %c0_41 = arith.constant 0 : index
    %96 = vector.load %arg15[%c0_39, %c0_40, %c0_41] : memref<1x1x1xf32, #tpu.memory_space<vmem>>, vector<1x1x1xf32>
    tpu.vector_store %arg15[%c0_39, %c0_40, %c0_41], %95 {strides = array<i32>} : memref<1x1x1xf32, #tpu.memory_space<vmem>>, vector<1x1x1xf32>,
    %97 = vector.extract_strided_slice %27 {offsets = [0, 0, 4], sizes = [1, 16, 12], strides = [1, 1, 1]} : vector<1x16x16xf32> to vector<1x16x12xf32>
    %cst_42 = arith.constant 0.000000e+00 : f32
    %98 = vector.broadcast %cst_42 : f32 to vector<1x16x4xf32>
    %99 = tpu.concatenate %97, %98 in 2 : vector<1x16x12xf32>, vector<1x16x4xf32> -> vector<1x16x16xf32>
    %100 = arith.subf %99, %27 : vector<1x16x16xf32>
    %101 = math.absf %100 : vector<1x16x16xf32>
    %102 = vector.extract_strided_slice %0 {offsets = [0, 0, 4], sizes = [1, 16, 12], strides = [1, 1, 1]} : vector<1x16x16xf32> to vector<1x16x12xf32>
    %cst_43 = arith.constant 0.000000e+00 : f32
    %103 = vector.broadcast %cst_43 : f32 to vector<1x16x4xf32>
    %104 = tpu.concatenate %102, %103 in 2 : vector<1x16x12xf32>, vector<1x16x4xf32> -> vector<1x16x16xf32>
    %105 = arith.mulf %104, %0 : vector<1x16x16xf32>
    %106 = arith.mulf %101, %105 : vector<1x16x16xf32>
    %107 = vector.extract_strided_slice %27 {offsets = [0, 4, 0], sizes = [1, 12, 16], strides = [1, 1, 1]} : vector<1x16x16xf32> to vector<1x12x16xf32>
    %cst_44 = arith.constant 0.000000e+00 : f32
    %108 = vector.broadcast %cst_44 : f32 to vector<1x4x16xf32>
    %109 = tpu.concatenate %107, %108 in 1 : vector<1x12x16xf32>, vector<1x4x16xf32> -> vector<1x16x16xf32>
    %110 = arith.subf %109, %27 : vector<1x16x16xf32>
    %111 = math.absf %110 : vector<1x16x16xf32>
    %112 = vector.extract_strided_slice %0 {offsets = [0, 4, 0], sizes = [1, 12, 16], strides = [1, 1, 1]} : vector<1x16x16xf32> to vector<1x12x16xf32>
    %cst_45 = arith.constant 0.000000e+00 : f32
    %113 = vector.broadcast %cst_45 : f32 to vector<1x4x16xf32>
    %114 = tpu.concatenate %112, %113 in 1 : vector<1x12x16xf32>, vector<1x4x16xf32> -> vector<1x16x16xf32>
    %115 = arith.mulf %114, %0 : vector<1x16x16xf32>
    %116 = arith.mulf %111, %115 : vector<1x16x16xf32>
    %c3_i32 = arith.constant 3 : i32
    %117 = vector.broadcast %c3_i32 : i32 to vector<1x16x16xi32>
    %118 = arith.andi %28, %117 : vector<1x16x16xi32>
    %c0_i32_46 = arith.constant 0 : i32
    %119 = vector.broadcast %c0_i32_46 : i32 to vector<1x16x16xi32>
    %120 = arith.cmpi eq, %118, %119 : vector<1x16x16xi32>
    %c3_i32_47 = arith.constant 3 : i32
    %121 = vector.broadcast %c3_i32_47 : i32 to vector<1x16x16xi32>
    %122 = arith.andi %29, %121 : vector<1x16x16xi32>
    %c0_i32_48 = arith.constant 0 : i32
    %123 = vector.broadcast %c0_i32_48 : i32 to vector<1x16x16xi32>
    %124 = arith.cmpi eq, %122, %123 : vector<1x16x16xi32>
    %125 = arith.andi %120, %124 : vector<1x16x16xi1>
    %126 = arith.addf %106, %116 : vector<1x16x16xf32>
    %cst_49 = arith.constant 0.000000e+00 : f32
    %127 = vector.broadcast %cst_49 : f32 to vector<1x16x16xf32>
    %128 = arith.select %125, %126, %127 : vector<1x16x16xi1>, vector<1x16x16xf32>
    %cst_50 = arith.constant 0.000000e+00 : f32
    %129 = vector.broadcast %cst_50 : f32 to vector<1x16x16xf32>
    %130 = arith.select %125, %0, %129 : vector<1x16x16xi1>, vector<1x16x16xf32>
    %cst_51 = arith.constant dense<0.000000e+00> : vector<1xf32>
    %131 = vector.multi_reduction <add>, %128, %cst_51 [1, 2] : vector<1x16x16xf32> to vector<1xf32>
    %132 = vector.shape_cast %131 : vector<1xf32> to vector<1x1x1xf32>
    %c0_52 = arith.constant 0 : index
    %c0_53 = arith.constant 0 : index
    %c0_54 = arith.constant 0 : index
    %133 = vector.load %arg12[%c0_52, %c0_53, %c0_54] : memref<1x1x1xf32, #tpu.memory_space<vmem>>, vector<1x1x1xf32>
    tpu.vector_store %arg12[%c0_52, %c0_53, %c0_54], %132 {strides = array<i32>} : memref<1x1x1xf32, #tpu.memory_space<vmem>>, vector<1x1x1xf32>,
    %cst_55 = arith.constant dense<0.000000e+00> : vector<1xf32>
    %134 = vector.multi_reduction <add>, %130, %cst_55 [1, 2] : vector<1x16x16xf32> to vector<1xf32>
    %135 = vector.shape_cast %134 : vector<1xf32> to vector<1x1x1xf32>
    %c0_56 = arith.constant 0 : index
    %c0_57 = arith.constant 0 : index
    %c0_58 = arith.constant 0 : index
    %136 = vector.load %arg16[%c0_56, %c0_57, %c0_58] : memref<1x1x1xf32, #tpu.memory_space<vmem>>, vector<1x1x1xf32>
    tpu.vector_store %arg16[%c0_56, %c0_57, %c0_58], %135 {strides = array<i32>} : memref<1x1x1xf32, #tpu.memory_space<vmem>>, vector<1x1x1xf32>,
    %137 = vector.extract_strided_slice %27 {offsets = [0, 0, 8], sizes = [1, 16, 8], strides = [1, 1, 1]} : vector<1x16x16xf32> to vector<1x16x8xf32>
    %cst_59 = arith.constant 0.000000e+00 : f32
    %138 = vector.broadcast %cst_59 : f32 to vector<1x16x8xf32>
    %139 = tpu.concatenate %137, %138 in 2 : vector<1x16x8xf32>, vector<1x16x8xf32> -> vector<1x16x16xf32>
    %140 = arith.subf %139, %27 : vector<1x16x16xf32>
    %141 = math.absf %140 : vector<1x16x16xf32>
    %142 = vector.extract_strided_slice %0 {offsets = [0, 0, 8], sizes = [1, 16, 8], strides = [1, 1, 1]} : vector<1x16x16xf32> to vector<1x16x8xf32>
    %cst_60 = arith.constant 0.000000e+00 : f32
    %143 = vector.broadcast %cst_60 : f32 to vector<1x16x8xf32>
    %144 = tpu.concatenate %142, %143 in 2 : vector<1x16x8xf32>, vector<1x16x8xf32> -> vector<1x16x16xf32>
    %145 = arith.mulf %144, %0 : vector<1x16x16xf32>
    %146 = arith.mulf %141, %145 : vector<1x16x16xf32>
    %147 = vector.extract_strided_slice %27 {offsets = [0, 8, 0], sizes = [1, 8, 16], strides = [1, 1, 1]} : vector<1x16x16xf32> to vector<1x8x16xf32>
    %cst_61 = arith.constant 0.000000e+00 : f32
    %148 = vector.broadcast %cst_61 : f32 to vector<1x8x16xf32>
    %149 = tpu.concatenate %147, %148 in 1 : vector<1x8x16xf32>, vector<1x8x16xf32> -> vector<1x16x16xf32>
    %150 = arith.subf %149, %27 : vector<1x16x16xf32>
    %151 = math.absf %150 : vector<1x16x16xf32>
    %152 = vector.extract_strided_slice %0 {offsets = [0, 8, 0], sizes = [1, 8, 16], strides = [1, 1, 1]} : vector<1x16x16xf32> to vector<1x8x16xf32>
    %cst_62 = arith.constant 0.000000e+00 : f32
    %153 = vector.broadcast %cst_62 : f32 to vector<1x8x16xf32>
    %154 = tpu.concatenate %152, %153 in 1 : vector<1x8x16xf32>, vector<1x8x16xf32> -> vector<1x16x16xf32>
    %155 = arith.mulf %154, %0 : vector<1x16x16xf32>
    %156 = arith.mulf %151, %155 : vector<1x16x16xf32>
    %c7_i32 = arith.constant 7 : i32
    %157 = vector.broadcast %c7_i32 : i32 to vector<1x16x16xi32>
    %158 = arith.andi %28, %157 : vector<1x16x16xi32>
    %c0_i32_63 = arith.constant 0 : i32
    %159 = vector.broadcast %c0_i32_63 : i32 to vector<1x16x16xi32>
    %160 = arith.cmpi eq, %158, %159 : vector<1x16x16xi32>
    %c7_i32_64 = arith.constant 7 : i32
    %161 = vector.broadcast %c7_i32_64 : i32 to vector<1x16x16xi32>
    %162 = arith.andi %29, %161 : vector<1x16x16xi32>
    %c0_i32_65 = arith.constant 0 : i32
    %163 = vector.broadcast %c0_i32_65 : i32 to vector<1x16x16xi32>
    %164 = arith.cmpi eq, %162, %163 : vector<1x16x16xi32>
    %165 = arith.andi %160, %164 : vector<1x16x16xi1>
    %166 = arith.addf %146, %156 : vector<1x16x16xf32>
    %cst_66 = arith.constant 0.000000e+00 : f32
    %167 = vector.broadcast %cst_66 : f32 to vector<1x16x16xf32>
    %168 = arith.select %165, %166, %167 : vector<1x16x16xi1>, vector<1x16x16xf32>
    %cst_67 = arith.constant 0.000000e+00 : f32
    %169 = vector.broadcast %cst_67 : f32 to vector<1x16x16xf32>
    %170 = arith.select %165, %0, %169 : vector<1x16x16xi1>, vector<1x16x16xf32>
    %cst_68 = arith.constant dense<0.000000e+00> : vector<1xf32>
    %171 = vector.multi_reduction <add>, %168, %cst_68 [1, 2] : vector<1x16x16xf32> to vector<1xf32>
    %172 = vector.shape_cast %171 : vector<1xf32> to vector<1x1x1xf32>
    %c0_69 = arith.constant 0 : index
    %c0_70 = arith.constant 0 : index
    %c0_71 = arith.constant 0 : index
    %173 = vector.load %arg13[%c0_69, %c0_70, %c0_71] : memref<1x1x1xf32, #tpu.memory_space<vmem>>, vector<1x1x1xf32>
    tpu.vector_store %arg13[%c0_69, %c0_70, %c0_71], %172 {strides = array<i32>} : memref<1x1x1xf32, #tpu.memory_space<vmem>>, vector<1x1x1xf32>,
    %cst_72 = arith.constant dense<0.000000e+00> : vector<1xf32>
    %174 = vector.multi_reduction <add>, %170, %cst_72 [1, 2] : vector<1x16x16xf32> to vector<1xf32>
    %175 = vector.shape_cast %174 : vector<1xf32> to vector<1x1x1xf32>
    %c0_73 = arith.constant 0 : index
    %c0_74 = arith.constant 0 : index
    %c0_75 = arith.constant 0 : index
    %176 = vector.load %arg17[%c0_73, %c0_74, %c0_75] : memref<1x1x1xf32, #tpu.memory_space<vmem>>, vector<1x1x1xf32>
    tpu.vector_store %arg17[%c0_73, %c0_74, %c0_75], %175 {strides = array<i32>} : memref<1x1x1xf32, #tpu.memory_space<vmem>>, vector<1x1x1xf32>,
    return
  }
  func.func @transform_0(%arg0: i32) -> i32 {
    %c0_i32 = arith.constant 0 : i32
    %c0_i32_0 = arith.constant 0 : i32
    return %c0_i32 : i32
  }
  func.func @transform_1(%arg0: i32) -> i32 {
    %c0_i32 = arith.constant 0 : i32
    %c0_i32_0 = arith.constant 0 : i32
    return %c0_i32 : i32
  }
  func.func @transform_2(%arg0: i32) -> i32 {
    %c0_i32 = arith.constant 0 : i32
    %c0_i32_0 = arith.constant 0 : i32
    return %c0_i32 : i32
  }
  func.func @transform_3(%arg0: i32) -> i32 {
    %c0_i32 = arith.constant 0 : i32
    %c0_i32_0 = arith.constant 0 : i32
    return %c0_i32 : i32
  }
  func.func @transform_4(%arg0: i32) -> (i32, i32, i32) {
    %c0_i32 = arith.constant 0 : i32
    %c0_i32_0 = arith.constant 0 : i32
    %c0_i32_1 = arith.constant 0 : i32
    return %arg0, %c0_i32, %c0_i32_0 : i32, i32, i32
  }
  func.func @transform_5(%arg0: i32) -> (i32, i32, i32) {
    %c0_i32 = arith.constant 0 : i32
    %c0_i32_0 = arith.constant 0 : i32
    %c0_i32_1 = arith.constant 0 : i32
    return %arg0, %c0_i32, %c0_i32_0 : i32, i32, i32
  }
  func.func @transform_6(%arg0: i32) -> (i32, i32, i32) {
    %c0_i32 = arith.constant 0 : i32
    %c0_i32_0 = arith.constant 0 : i32
    %c0_i32_1 = arith.constant 0 : i32
    return %arg0, %c0_i32, %c0_i32_0 : i32, i32, i32
  }
  func.func @transform_7(%arg0: i32) -> (i32, i32, i32) {
    %c0_i32 = arith.constant 0 : i32
    %c0_i32_0 = arith.constant 0 : i32
    %c0_i32_1 = arith.constant 0 : i32
    return %arg0, %c0_i32, %c0_i32_0 : i32, i32, i32
  }
  func.func @transform_8(%arg0: i32) -> (i32, i32, i32) {
    %c0_i32 = arith.constant 0 : i32
    %c0_i32_0 = arith.constant 0 : i32
    %c0_i32_1 = arith.constant 0 : i32
    return %arg0, %c0_i32, %c0_i32_0 : i32, i32, i32
  }
  func.func @transform_9(%arg0: i32) -> (i32, i32, i32) {
    %c0_i32 = arith.constant 0 : i32
    %c0_i32_0 = arith.constant 0 : i32
    %c0_i32_1 = arith.constant 0 : i32
    return %arg0, %c0_i32, %c0_i32_0 : i32, i32, i32
  }
  func.func @transform_10(%arg0: i32) -> (i32, i32, i32) {
    %c0_i32 = arith.constant 0 : i32
    %c0_i32_0 = arith.constant 0 : i32
    %c0_i32_1 = arith.constant 0 : i32
    return %arg0, %c0_i32, %c0_i32_0 : i32, i32, i32
  }
  func.func @transform_11(%arg0: i32) -> (i32, i32, i32) {
    %c0_i32 = arith.constant 0 : i32
    %c0_i32_0 = arith.constant 0 : i32
    %c0_i32_1 = arith.constant 0 : i32
    return %arg0, %c0_i32, %c0_i32_0 : i32, i32, i32
  }
  func.func @transform_12(%arg0: i32) -> (i32, i32, i32) {
    %c0_i32 = arith.constant 0 : i32
    %c0_i32_0 = arith.constant 0 : i32
    %c0_i32_1 = arith.constant 0 : i32
    return %arg0, %c0_i32, %c0_i32_0 : i32, i32, i32
  }
  func.func @transform_13(%arg0: i32) -> (i32, i32, i32) {
    %c0_i32 = arith.constant 0 : i32
    %c0_i32_0 = arith.constant 0 : i32
    %c0_i32_1 = arith.constant 0 : i32
    return %arg0, %c0_i32, %c0_i32_0 : i32, i32, i32
  }
  func.func @transform_14(%arg0: i32) -> (i32, i32, i32) {
    %c0_i32 = arith.constant 0 : i32
    %c0_i32_0 = arith.constant 0 : i32
    %c0_i32_1 = arith.constant 0 : i32
    return %arg0, %c0_i32, %c0_i32_0 : i32, i32, i32
  }
  func.func @transform_15(%arg0: i32) -> (i32, i32, i32) {
    %c0_i32 = arith.constant 0 : i32
    %c0_i32_0 = arith.constant 0 : i32
    %c0_i32_1 = arith.constant 0 : i32
    return %arg0, %c0_i32, %c0_i32_0 : i32, i32, i32
  }
  func.func @transform_16(%arg0: i32) -> (i32, i32, i32) {
    %c0_i32 = arith.constant 0 : i32
    %c0_i32_0 = arith.constant 0 : i32
    %c0_i32_1 = arith.constant 0 : i32
    return %arg0, %c0_i32, %c0_i32_0 : i32, i32, i32
  }
}

</mosaic_0001>

<llo_original>
// kernel: weighted_affine_loss.2
$region0: #{weighted_affine_loss.2}
  #allocation0 [shape = 'u32[]', space=smem, size = 0x4, offset = 0x4, fixed_abs, tag = 'smem constant byte address 0x4 - core index']
  #allocation1 [shape = 'u32[72,128]{1,0:T(1,128)}', space=vmem, size = 0x9000, scoped, tag = 'internal scratch']
  %s0 = inlined_call_operand.vmem [shape: f32[2], index: 0, kind: input, shape index: {}]
  %s1 = inlined_call_operand.vmem [shape: f32[2], index: 1, kind: input, shape index: {}]
  %s2 = inlined_call_operand.vmem [shape: f32[2,16,16], index: 2, kind: input, shape index: {}]
  %s3 = inlined_call_operand.vmem [shape: f32[2,16,16], index: 3, kind: input, shape index: {}]
  %s4 = inlined_call_operand.vmem [shape: f32[2,16,16], index: 4, kind: input, shape index: {}]
  %s5 = inlined_call_operand.vmem [shape: f32[2,1,1], index: 5, kind: output, shape index: {0}]
  %s6 = inlined_call_operand.vmem [shape: f32[2,1,1], index: 6, kind: output, shape index: {1}]
  %s7 = inlined_call_operand.vmem [shape: f32[2,1,1], index: 7, kind: output, shape index: {2}]
  %8 = xla_tuple %s5, %s6, %s7
  %s9 = sld [smem:[#allocation0]]
  $region81: #{weighted_affine_loss.2} parent=0
    _
  %s11 = ssub.s32 1, %s9
  %s12 = scalar_select 0, %s11, %s9
  $region1: #{weighted_affine_loss.2} parent=0
    #allocation2 [shape = 'u8[512]{0}', space=smem, size = 0x200, scoped, tag = 'input window, operand 0, single buffered']
    #allocation3 [shape = 's32[2]{0}', space=sflag, size = 0x8, scoped, tag = 'scoped memory for weighted_affine_loss.2']
    #allocation4 [shape = 'u8[512]{0}', space=smem, size = 0x200, scoped, tag = 'input window, operand 1, single buffered']
    #allocation5 [shape = 's32[1]{0}', space=sflag, size = 0x4, scoped, tag = 'scoped memory for weighted_affine_loss.2']
    %13 = vsyncpa [#allocation3], 0
    %14 = vsyncpa [#allocation5], 0
    loop: start=0, step=1, limit=4
    $region2: #{weighted_affine_loss.2} parent=1 // loop_pre_header
      _
    $region3: #{weighted_affine_loss.2} parent=1 // loop_header
      %s16 = sphi 0, %s20
      %p17 = scmp.ge.s32.totalorder %s16, 4
      %s23 = sphi 0, %s35
      %s24 = sphi 0, %s31
      %s25 = sphi 0, %s23
      %s26 = sphi 0, %s24
      %s27 = sphi 0, %s25
      %s28 = sphi 0, %s26
      %s36 = sphi 0, %s36
      %s38 = sphi 0, %s36
      %s39 = sphi 0, %s38
      %s53 = sphi 0, %s39
      %s57 = sphi 0, %s57
      %s59 = sphi 0, %s57
      %s60 = sphi 0, %s59
      %s74 = sphi 0, %s60
      %s82 = sphi 0, %s84
      %s85 = sphi 0, %s82
      %s86 = sphi 0, %s85
      %s102 = sphi 0, %s86
      %s110 = sphi 0, %s112
      %s113 = sphi 0, %s110
      %s114 = sphi 0, %s113
      %s130 = sphi 0, %s114
      %s138 = sphi 0, %s140
      %s141 = sphi 0, %s138
      %s142 = sphi 0, %s141
      %s158 = sphi 0, %s142
      %s164 = sphi 0, %s166
      %s167 = sphi 0, %s164
      %s168 = sphi 0, %s167
      %s184 = sphi 0, %s168
      %s190 = sphi 0, %s192
      %s193 = sphi 0, %s190
      %s194 = sphi 0, %s193
      %s210 = sphi 0, %s194
      %s216 = sphi 0, %s218
      %s219 = sphi 0, %s216
      %s220 = sphi 0, %s219
      %s236 = sphi 0, %s220
    $region4: #{weighted_affine_loss.2} parent=1 // loop_header_branch
      %19 = sbr.rel (%p17) target = $region8
    $region5: #{weighted_affine_loss.2} parent=1 // loop_body
      %s21 = ssub.s32 %s16, 1
      %s22 = ssub.s32 %s16, 2
      %s29 = sadd.s32 1, %s24
      %p30 = scmp.ge.s32.totalorder %s29, 1
      %s31 = scalar_select %p30, 0, %s29
      %s32 = sadd.s32 1, %s23
      %s33 = scalar_select %p30, %s32, %s23
      %p34 = scmp.ge.s32.totalorder %s33, 2
      %s35 = scalar_select %p34, 0, %s33
      %s37 = sadd.s32 %s36, 1
      %p40 = scmp.eq.s32.totalorder %s16, 1
      %p41 = scmp.ne.s32.totalorder %s36, %s38
      %p42 = scmp.eq.s32.totalorder %s16, 0
      %p43 = por %p41, %p42
      %p44 = scmp.ne.s32.totalorder %s36, %s38
      %p45 = scmp.eq.s32.totalorder %s21, 1
      %p46 = por %p44, %p45
      %p47 = scmp.ne.s32.totalorder %s38, %s39
      %p48 = scmp.eq.s32.totalorder %s21, 0
      %p49 = por %p47, %p48
      %p50 = scmp.ne.s32.totalorder %s38, %s39
      %p51 = scmp.eq.s32.totalorder %s22, 1
      %p52 = por %p50, %p51
      %p54 = scmp.ne.s32.totalorder %s39, %s53
      %p55 = scmp.eq.s32.totalorder %s22, 0
      %p56 = por %p54, %p55
      %s58 = sadd.s32 %s57, 1
      %p61 = scmp.eq.s32.totalorder %s16, 1
      %p62 = scmp.ne.s32.totalorder %s57, %s59
      %p63 = scmp.eq.s32.totalorder %s16, 0
      %p64 = por %p62, %p63
      %p65 = scmp.ne.s32.totalorder %s57, %s59
      %p66 = scmp.eq.s32.totalorder %s21, 1
      %p67 = por %p65, %p66
      %p68 = scmp.ne.s32.totalorder %s59, %s60
      %p69 = scmp.eq.s32.totalorder %s21, 0
      %p70 = por %p68, %p69
      %p71 = scmp.ne.s32.totalorder %s59, %s60
      %p72 = scmp.eq.s32.totalorder %s22, 1
      %p73 = por %p71, %p72
      %p75 = scmp.ne.s32.totalorder %s60, %s74
      %p76 = scmp.eq.s32.totalorder %s22, 0
      %p77 = por %p75, %p76
      %s78 = ssub.s32 %s23, %s35
      %s79 = ssub.s32 %s24, %s31
      %s80 = sor.u32 %s78, %s79
      %p81 = scmp.eq.s32.totalorder %s80, 0
      %s83 = sadd.s32 %s82, 1
      %s84 = scalar_select %p81, %s82, %s83
      %p87 = pneg %p81
      %p88 = scmp.eq.s32.totalorder %s16, 1
      %p89 = por %p87, %p88
      %p90 = scmp.ne.s32.totalorder %s82, %s85
      %p91 = scmp.eq.s32.totalorder %s16, 0
      %p92 = por %p90, %p91
      %p93 = scmp.ne.s32.totalorder %s82, %s85
      %p94 = scmp.eq.s32.totalorder %s21, 1
      %p95 = por %p93, %p94
      %p96 = scmp.ne.s32.totalorder %s85, %s86
      %p97 = scmp.eq.s32.totalorder %s21, 0
      %p98 = por %p96, %p97
      %p99 = scmp.ne.s32.totalorder %s85, %s86
      %p100 = scmp.eq.s32.totalorder %s22, 1
      %p101 = por %p99, %p100
      %p103 = scmp.ne.s32.totalorder %s86, %s102
      %p104 = scmp.eq.s32.totalorder %s22, 0
      %p105 = por %p103, %p104
      %s106 = ssub.s32 %s23, %s35
      %s107 = ssub.s32 %s24, %s31
      %s108 = sor.u32 %s106, %s107
      %p109 = scmp.eq.s32.totalorder %s108, 0
      %s111 = sadd.s32 %s110, 1
      %s112 = scalar_select %p109, %s110, %s111
      %p115 = pneg %p109
      %p116 = scmp.eq.s32.totalorder %s16, 1
      %p117 = por %p115, %p116
      %p118 = scmp.ne.s32.totalorder %s110, %s113
      %p119 = scmp.eq.s32.totalorder %s16, 0
      %p120 = por %p118, %p119
      %p121 = scmp.ne.s32.totalorder %s110, %s113
      %p122 = scmp.eq.s32.totalorder %s21, 1
      %p123 = por %p121, %p122
      %p124 = scmp.ne.s32.totalorder %s113, %s114
      %p125 = scmp.eq.s32.totalorder %s21, 0
      %p126 = por %p124, %p125
      %p127 = scmp.ne.s32.totalorder %s113, %s114
      %p128 = scmp.eq.s32.totalorder %s22, 1
      %p129 = por %p127, %p128
      %p131 = scmp.ne.s32.totalorder %s114, %s130
      %p132 = scmp.eq.s32.totalorder %s22, 0
      %p133 = por %p131, %p132
      %s134 = ssub.s32 %s23, %s35
      %s135 = ssub.s32 %s24, %s31
      %s136 = sor.u32 %s134, %s135
      %p137 = scmp.eq.s32.totalorder %s136, 0
      %s139 = sadd.s32 %s138, 1
      %s140 = scalar_select %p137, %s138, %s139
      %p143 = pneg %p137
      %p144 = scmp.eq.s32.totalorder %s16, 1
      %p145 = por %p143, %p144
      %p146 = scmp.ne.s32.totalorder %s138, %s141
      %p147 = scmp.eq.s32.totalorder %s16, 0
      %p148 = por %p146, %p147
      %p149 = scmp.ne.s32.totalorder %s138, %s141
      %p150 = scmp.eq.s32.totalorder %s21, 1
      %p151 = por %p149, %p150
      %p152 = scmp.ne.s32.totalorder %s141, %s142
      %p153 = scmp.eq.s32.totalorder %s21, 0
      %p154 = por %p152, %p153
      %p155 = scmp.ne.s32.totalorder %s141, %s142
      %p156 = scmp.eq.s32.totalorder %s22, 1
      %p157 = por %p155, %p156
      %p159 = scmp.ne.s32.totalorder %s142, %s158
      %p160 = scmp.eq.s32.totalorder %s22, 0
      %p161 = por %p159, %p160
      %s162 = ssub.s32 %s23, %s35
      %p163 = scmp.eq.s32.totalorder %s162, 0
      %s165 = sadd.s32 %s164, 1
      %s166 = scalar_select %p163, %s164, %s165
      %p169 = pneg %p163
      %p170 = scmp.eq.s32.totalorder %s16, 1
      %p171 = por %p169, %p170
      %p172 = scmp.ne.s32.totalorder %s164, %s167
      %p173 = scmp.eq.s32.totalorder %s16, 0
      %p174 = por %p172, %p173
      %p175 = scmp.ne.s32.totalorder %s164, %s167
      %p176 = scmp.eq.s32.totalorder %s21, 1
      %p177 = por %p175, %p176
      %p178 = scmp.ne.s32.totalorder %s167, %s168
      %p179 = scmp.eq.s32.totalorder %s21, 0
      %p180 = por %p178, %p179
      %p181 = scmp.ne.s32.totalorder %s167, %s168
      %p182 = scmp.eq.s32.totalorder %s22, 1
      %p183 = por %p181, %p182
      %p185 = scmp.ne.s32.totalorder %s168, %s184
      %p186 = scmp.eq.s32.totalorder %s22, 0
      %p187 = por %p185, %p186
      %s188 = ssub.s32 %s23, %s35
      %p189 = scmp.eq.s32.totalorder %s188, 0
      %s191 = sadd.s32 %s190, 1
      %s192 = scalar_select %p189, %s190, %s191
      %p195 = pneg %p189
      %p196 = scmp.eq.s32.totalorder %s16, 1
      %p197 = por %p195, %p196
      %p198 = scmp.ne.s32.totalorder %s190, %s193
      %p199 = scmp.eq.s32.totalorder %s16, 0
      %p200 = por %p198, %p199
      %p201 = scmp.ne.s32.totalorder %s190, %s193
      %p202 = scmp.eq.s32.totalorder %s21, 1
      %p203 = por %p201, %p202
      %p204 = scmp.ne.s32.totalorder %s193, %s194
      %p205 = scmp.eq.s32.totalorder %s21, 0
      %p206 = por %p204, %p205
      %p207 = scmp.ne.s32.totalorder %s193, %s194
      %p208 = scmp.eq.s32.totalorder %s22, 1
      %p209 = por %p207, %p208
      %p211 = scmp.ne.s32.totalorder %s194, %s210
      %p212 = scmp.eq.s32.totalorder %s22, 0
      %p213 = por %p211, %p212
      %s214 = ssub.s32 %s23, %s35
      %p215 = scmp.eq.s32.totalorder %s214, 0
      %s217 = sadd.s32 %s216, 1
      %s218 = scalar_select %p215, %s216, %s217
      %p221 = pneg %p215
      %p222 = scmp.eq.s32.totalorder %s16, 1
      %p223 = por %p221, %p222
      %p224 = scmp.ne.s32.totalorder %s216, %s219
      %p225 = scmp.eq.s32.totalorder %s16, 0
      %p226 = por %p224, %p225
      %p227 = scmp.ne.s32.totalorder %s216, %s219
      %p228 = scmp.eq.s32.totalorder %s21, 1
      %p229 = por %p227, %p228
      %p230 = scmp.ne.s32.totalorder %s219, %s220
      %p231 = scmp.eq.s32.totalorder %s21, 0
      %p232 = por %p230, %p231
      %p233 = scmp.ne.s32.totalorder %s219, %s220
      %p234 = scmp.eq.s32.totalorder %s22, 1
      %p235 = por %p233, %p234
      %p237 = scmp.ne.s32.totalorder %s220, %s236
      %p238 = scmp.eq.s32.totalorder %s22, 0
      %p239 = por %p237, %p238
      %p240 = scmp.le.s32.totalorder 1, %s16
      %p241 = scmp.lt.s32.totalorder %s16, 3
      %p242 = pnand %p240, %p241
      %p243 = pneg %p242
      // Predicated region
      $region9: #{weighted_affine_loss.2} parent=5 // pred_check
        _
      $region10: #{weighted_affine_loss.2} parent=5 // pred_check_branch
        %245 = sbr.rel (%p242) target = $region12
      $region11: #{weighted_affine_loss.2} parent=5 // pred_region
        %s246 = ssub.s32 %s16, 1
        // Predicated region
        $region13: #{weighted_affine_loss.2} parent=11 // pred_check
          %p247 = pneg %p49
        $region14: #{weighted_affine_loss.2} parent=11 // pred_check_branch
          %249 = sbr.rel (%p247) target = $region16
        $region15: #{weighted_affine_loss.2} parent=11 // pred_region
          %251 = vsyncadd [#allocation3], 0
          %s253 = sshll.u32 %s0, 4
          %s254 = int_to_ptr.vmem [resolvable:$true] %s253
          %256 = dma.vmem_to_smem %s254, 16, [#allocation2], [#allocation3]
        $region16: #{weighted_affine_loss.2} parent=11 // pred_fallthru
          _
        // Predicated region
        $region17: #{weighted_affine_loss.2} parent=11 // pred_check
          %p257 = pneg %p70
        $region18: #{weighted_affine_loss.2} parent=11 // pred_check_branch
          %259 = sbr.rel (%p257) target = $region20
        $region19: #{weighted_affine_loss.2} parent=11 // pred_region
          %261 = vsyncadd [#allocation5], 0
          %s263 = sshll.u32 %s1, 4
          %s264 = int_to_ptr.vmem [resolvable:$true] %s263
          %266 = dma.vmem_to_smem %s264, 16, [#allocation4], [#allocation5]
        $region20: #{weighted_affine_loss.2} parent=11 // pred_fallthru
          _
      $region12: #{weighted_affine_loss.2} parent=5 // pred_fallthru
        _
      %p267 = scmp.lt.s32.totalorder %s16, 2
      // Predicated region
      $region21: #{weighted_affine_loss.2} parent=5 // pred_check
        %p268 = pneg %p267
      $region22: #{weighted_affine_loss.2} parent=5 // pred_check_branch
        %270 = sbr.rel (%p268) target = $region24
      $region23: #{weighted_affine_loss.2} parent=5 // pred_region
        // Predicated region
        $region25: #{weighted_affine_loss.2} parent=23 // pred_check
          %p271 = pneg %p92
        $region26: #{weighted_affine_loss.2} parent=23 // pred_check_branch
          %273 = sbr.rel (%p271) target = $region28
        $region27: #{weighted_affine_loss.2} parent=23 // pred_region
          %s274 = smul.u32 2, %s24
          %p275 = scmp.lt.s32.totalorder %s23, 1
          %s276 = scalar_select %p275, %s23, 1
          %p277 = scmp.lt.s32.totalorder %s274, 1
          %s278 = scalar_select %p277, %s274, 1
          %s279 = smul.addr %s276, 2
          %s280 = sadd.s32 %s278, %s279
          %s281 = smul.addr %s280, 8
          %s282 = scalar_lea.vmem %s2, %s281
          %s283 = smul.u32 2, %s24
        $region28: #{weighted_affine_loss.2} parent=23 // pred_fallthru
          _
        // Predicated region
        $region29: #{weighted_affine_loss.2} parent=23 // pred_check
          %p284 = pneg %p120
        $region30: #{weighted_affine_loss.2} parent=23 // pred_check_branch
          %286 = sbr.rel (%p284) target = $region32
        $region31: #{weighted_affine_loss.2} parent=23 // pred_region
          %s287 = smul.u32 2, %s24
          %p288 = scmp.lt.s32.totalorder %s23, 1
          %s289 = scalar_select %p288, %s23, 1
          %p290 = scmp.lt.s32.totalorder %s287, 1
          %s291 = scalar_select %p290, %s287, 1
          %s292 = smul.addr %s289, 2
          %s293 = sadd.s32 %s291, %s292
          %s294 = smul.addr %s293, 8
          %s295 = scalar_lea.vmem %s3, %s294
          %s296 = smul.u32 2, %s24
        $region32: #{weighted_affine_loss.2} parent=23 // pred_fallthru
          _
        // Predicated region
        $region33: #{weighted_affine_loss.2} parent=23 // pred_check
          %p297 = pneg %p148
        $region34: #{weighted_affine_loss.2} parent=23 // pred_check_branch
          %299 = sbr.rel (%p297) target = $region36
        $region35: #{weighted_affine_loss.2} parent=23 // pred_region
          %s300 = smul.u32 2, %s24
          %p301 = scmp.lt.s32.totalorder %s23, 1
          %s302 = scalar_select %p301, %s23, 1
          %p303 = scmp.lt.s32.totalorder %s300, 1
          %s304 = scalar_select %p303, %s300, 1
          %s305 = smul.addr %s302, 2
          %s306 = sadd.s32 %s304, %s305
          %s307 = smul.addr %s306, 8
          %s308 = scalar_lea.vmem %s4, %s307
          %s309 = smul.u32 2, %s24
        $region36: #{weighted_affine_loss.2} parent=23 // pred_fallthru
          _
      $region24: #{weighted_affine_loss.2} parent=5 // pred_fallthru
        _
      %p310 = scmp.le.s32.totalorder 1, %s16
      %p311 = scmp.lt.s32.totalorder %s16, 3
      %p312 = pnand %p310, %p311
      %p313 = pneg %p312
      // Predicated region
      $region37: #{weighted_affine_loss.2} parent=5 // pred_check
        _
      $region38: #{weighted_affine_loss.2} parent=5 // pred_check_branch
        %315 = sbr.rel (%p312) target = $region40
      $region39: #{weighted_affine_loss.2} parent=5 // pred_region
        %s316 = ssub.s32 %s16, 1
        // Predicated region
        $region41: #{weighted_affine_loss.2} parent=39 // pred_check
          %p317 = pneg %p49
        $region42: #{weighted_affine_loss.2} parent=39 // pred_check_branch
          %319 = sbr.rel (%p317) target = $region44
        $region43: #{weighted_affine_loss.2} parent=39 // pred_region
          %321 = dma.done [#allocation3], 16
        $region44: #{weighted_affine_loss.2} parent=39 // pred_fallthru
          _
        // Predicated region
        $region45: #{weighted_affine_loss.2} parent=39 // pred_check
          %p322 = pneg %p70
        $region46: #{weighted_affine_loss.2} parent=39 // pred_check_branch
          %324 = sbr.rel (%p322) target = $region48
        $region47: #{weighted_affine_loss.2} parent=39 // pred_region
          %326 = dma.done [#allocation5], 16
        $region48: #{weighted_affine_loss.2} parent=39 // pred_fallthru
          _
        %327 = sfence
        %p328 = pneg %p49
        %p329 = pneg %p46
        %p330 = pneg %p70
        %p331 = pneg %p67
        %s332 = smul.u32 2, %s26
        %p333 = scmp.lt.s32.totalorder %s25, 1
        %s334 = scalar_select %p333, %s25, 1
        %p335 = scmp.lt.s32.totalorder %s332, 1
        %s336 = scalar_select %p335, %s332, 1
        %s337 = smul.addr %s334, 2
        %s338 = sadd.s32 %s336, %s337
        %s339 = smul.addr %s338, 8
        %s340 = scalar_lea.vmem %s2, %s339
        %p341 = pneg %p98
        %p342 = pneg %p95
        %s343 = smul.u32 2, %s26
        %p344 = scmp.lt.s32.totalorder %s25, 1
        %s345 = scalar_select %p344, %s25, 1
        %p346 = scmp.lt.s32.totalorder %s343, 1
        %s347 = scalar_select %p346, %s343, 1
        %s348 = smul.addr %s345, 2
        %s349 = sadd.s32 %s347, %s348
        %s350 = smul.addr %s349, 8
        %s351 = scalar_lea.vmem %s3, %s350
        %p352 = pneg %p126
        %p353 = pneg %p123
        %s354 = smul.u32 2, %s26
        %p355 = scmp.lt.s32.totalorder %s25, 1
        %s356 = scalar_select %p355, %s25, 1
        %p357 = scmp.lt.s32.totalorder %s354, 1
        %s358 = scalar_select %p357, %s354, 1
        %s359 = smul.addr %s356, 2
        %s360 = sadd.s32 %s358, %s359
        %s361 = smul.addr %s360, 8
        %s362 = scalar_lea.vmem %s4, %s361
        %p363 = pneg %p154
        %p364 = pneg %p151
        %p365 = pneg %p180
        %p366 = pneg %p177
        %p367 = scmp.lt.s32.totalorder %s25, 1
        %s368 = scalar_select %p367, %s25, 1
        %s369 = scalar_lea.vmem %s5, %s368
        %p370 = pneg %p206
        %p371 = pneg %p203
        %p372 = scmp.lt.s32.totalorder %s25, 1
        %s373 = scalar_select %p372, %s25, 1
        %s374 = scalar_lea.vmem %s6, %s373
        %p375 = pneg %p232
        %p376 = pneg %p229
        %p377 = scmp.lt.s32.totalorder %s25, 1
        %s378 = scalar_select %p377, %s25, 1
        %s379 = scalar_lea.vmem %s7, %s378
        %s380 = smul.u32 2, %s26
        %p381 = scmp.lt.s32.totalorder %s25, 1
        %s382 = scalar_select %p381, %s25, 1
        %p383 = scmp.lt.s32.totalorder %s380, 1
        %s384 = scalar_select %p383, %s380, 1
        %s385 = smul.addr %s382, 2
        %s386 = sadd.s32 %s384, %s385
        %s387 = smul.addr %s386, 8
        %s388 = scalar_lea.vmem %s2, %s387
        %s389 = smul.u32 2, %s26
        %s390 = smul.u32 2, %s26
        %p391 = scmp.lt.s32.totalorder %s25, 1
        %s392 = scalar_select %p391, %s25, 1
        %p393 = scmp.lt.s32.totalorder %s390, 1
        %s394 = scalar_select %p393, %s390, 1
        %s395 = smul.addr %s392, 2
        %s396 = sadd.s32 %s394, %s395
        %s397 = smul.addr %s396, 8
        %s398 = scalar_lea.vmem %s3, %s397
        %s399 = smul.u32 2, %s26
        %s400 = smul.u32 2, %s26
        %p401 = scmp.lt.s32.totalorder %s25, 1
        %s402 = scalar_select %p401, %s25, 1
        %p403 = scmp.lt.s32.totalorder %s400, 1
        %s404 = scalar_select %p403, %s400, 1
        %s405 = smul.addr %s402, 2
        %s406 = sadd.s32 %s404, %s405
        %s407 = smul.addr %s406, 8
        %s408 = scalar_lea.vmem %s4, %s407
        %s409 = smul.u32 2, %s26
        %p410 = scmp.lt.s32.totalorder %s25, 1
        %s411 = scalar_select %p410, %s25, 1
        %s412 = scalar_lea.vmem %s5, %s411
        %p413 = scmp.lt.s32.totalorder %s25, 1
        %s414 = scalar_select %p413, %s25, 1
        %s415 = scalar_lea.vmem %s6, %s414
        %p416 = scmp.lt.s32.totalorder %s25, 1
        %s417 = scalar_select %p416, %s25, 1
        %s418 = scalar_lea.vmem %s7, %s417
        %p419 = scmp.eq.s32.totalorder %s26, 0
        // Predicated region
        $region49: #{weighted_affine_loss.2} parent=39 // pred_check
          %p420 = pneg %p419
        $region50: #{weighted_affine_loss.2} parent=39 // pred_check_branch
          %422 = sbr.rel (%p420) target = $region52
        $region51: #{weighted_affine_loss.2} parent=39 // pred_region
          %vm423 = vcmask 0
          %424 = vst.msk [vmem:[%s412] sm:$0x1] %vm423, 0.0
          %425 = vst.msk [vmem:[%s415] sm:$0x1] %vm423, 0.0
          %426 = vst.msk [vmem:[%s418] sm:$0x1] %vm423, 0.0
        $region52: #{weighted_affine_loss.2} parent=39 // pred_fallthru
          _
        %v427 = vld [vmem:[%s408] sm:$0xff]
        %v428 = vld [vmem:[%s408 + $0x8] sm:$0xff]
        %v429 = vld [vmem:[%s412] sm:$0x1]
        %vm430 = vcmask 130048
        %v431 = vsel %vm430, %v427, 0.0
        %v432 = vsel %vm430, %v428, 0.0
        %v433 = vadd.f32 %v431, %v432
        %434 = vadd.xlane.f32.xlu0 %v433
        %v435 = vpop.xlane.xlu0 %434
        %v436 = vrot.slane %v435, 4
        %v437 = vadd.f32 %v435, %v436
        %v438 = vrot.slane %v437, 2
        %v439 = vadd.f32 %v437, %v438
        %v440 = vrot.slane %v439, 1
        %v441 = vadd.f32 %v439, %v440
        %v442 = vadd.f32 %v429, %v441
        %vm443 = vcmask 0
        %444 = vst.msk [vmem:[%s412] sm:$0x1] %vm443, %v442
        %v445 = vld [vmem:[%s415] sm:$0x1]
        %v446 = vld [vmem:[%s388] sm:$0xff]
        %v447 = vld [vmem:[%s388 + $0x8] sm:$0xff]
        %s448 = sld [smem:[#allocation2 + %s25]]
        %v449 = vstv %s448
        %v450 = vsub.f32 %v446, %v449
        %v451 = vsub.f32 %v447, %v449
        %v452 = vand.u32 2147483647, %v450
        %v453 = vand.u32 2147483647, %v451
        %v454 = vmul.f32 %v427, %v452
        %v455 = vmul.f32 %v428, %v453
        %v456 = vsel %vm430, %v454, 0.0
        %v457 = vsel %vm430, %v455, 0.0
        %v458 = vadd.f32 %v456, %v457
        %459 = vadd.xlane.f32.xlu0 %v458
        %v460 = vpop.xlane.xlu0 %459
        %v461 = vrot.slane %v460, 4
        %v462 = vadd.f32 %v460, %v461
        %v463 = vrot.slane %v462, 2
        %v464 = vadd.f32 %v462, %v463
        %v465 = vrot.slane %v464, 1
        %v466 = vadd.f32 %v464, %v465
        %v467 = vadd.f32 %v445, %v466
        %468 = vst.msk [vmem:[%s415] sm:$0x1] %vm443, %v467
        %v469 = vld [vmem:[%s418] sm:$0x1]
        %v470 = vld [vmem:[%s398] sm:$0xff]
        %v471 = vld [vmem:[%s398 + $0x8] sm:$0xff]
        %s472 = sld [smem:[#allocation4 + %s25]]
        %v473 = vstv %s472
        %v474 = vsub.f32 %v470, %v473
        %v475 = vsub.f32 %v471, %v473
        %v476 = vand.u32 2147483647, %v474
        %v477 = vand.u32 2147483647, %v475
        %v478 = vmul.f32 %v427, %v476
        %v479 = vmul.f32 %v428, %v477
        %v480 = vsel %vm430, %v478, 0.0
        %v481 = vsel %vm430, %v479, 0.0
        %v482 = vadd.f32 %v480, %v481
        %483 = vadd.xlane.f32.xlu0 %v482
        %v484 = vpop.xlane.xlu0 %483
        %v485 = vrot.slane %v484, 4
        %v486 = vadd.f32 %v484, %v485
        %v487 = vrot.slane %v486, 2
        %v488 = vadd.f32 %v486, %v487
        %v489 = vrot.slane %v488, 1
        %v490 = vadd.f32 %v488, %v489
        %v491 = vadd.f32 %v469, %v490
        %492 = vst.msk [vmem:[%s418] sm:$0x1] %vm443, %v491
        %p493 = scmp.lt.s32.totalorder %s25, 1
        %s494 = scalar_select %p493, %s25, 1
        %s495 = scalar_lea.vmem %s5, %s494
        %p496 = scmp.lt.s32.totalorder %s25, 1
        %s497 = scalar_select %p496, %s25, 1
        %s498 = scalar_lea.vmem %s6, %s497
        %p499 = scmp.lt.s32.totalorder %s25, 1
        %s500 = scalar_select %p499, %s25, 1
        %s501 = scalar_lea.vmem %s7, %s500
        // Predicated region
        $region53: #{weighted_affine_loss.2} parent=39 // pred_check
          %p502 = pneg %p177
        $region54: #{weighted_affine_loss.2} parent=39 // pred_check_branch
          %504 = sbr.rel (%p502) target = $region56
        $region55: #{weighted_affine_loss.2} parent=39 // pred_region
          _
        $region56: #{weighted_affine_loss.2} parent=39 // pred_fallthru
          _
        // Predicated region
        $region57: #{weighted_affine_loss.2} parent=39 // pred_check
          %p505 = pneg %p203
        $region58: #{weighted_affine_loss.2} parent=39 // pred_check_branch
          %507 = sbr.rel (%p505) target = $region60
        $region59: #{weighted_affine_loss.2} parent=39 // pred_region
          _
        $region60: #{weighted_affine_loss.2} parent=39 // pred_fallthru
          _
        // Predicated region
        $region61: #{weighted_affine_loss.2} parent=39 // pred_check
          %p508 = pneg %p229
        $region62: #{weighted_affine_loss.2} parent=39 // pred_check_branch
          %510 = sbr.rel (%p508) target = $region64
        $region63: #{weighted_affine_loss.2} parent=39 // pred_region
          _
        $region64: #{weighted_affine_loss.2} parent=39 // pred_fallthru
          _
      $region40: #{weighted_affine_loss.2} parent=5 // pred_fallthru
        _
      %p511 = scmp.le.s32.totalorder 2, %s16
      // Predicated region
      $region65: #{weighted_affine_loss.2} parent=5 // pred_check
        %p512 = pneg %p511
      $region66: #{weighted_affine_loss.2} parent=5 // pred_check_branch
        %514 = sbr.rel (%p512) target = $region68
      $region67: #{weighted_affine_loss.2} parent=5 // pred_region
        %s515 = ssub.s32 %s16, 2
        // Predicated region
        $region69: #{weighted_affine_loss.2} parent=67 // pred_check
          %p516 = pneg %p183
        $region70: #{weighted_affine_loss.2} parent=67 // pred_check_branch
          %518 = sbr.rel (%p516) target = $region72
        $region71: #{weighted_affine_loss.2} parent=67 // pred_region
          %p519 = scmp.lt.s32.totalorder %s27, 1
          %s520 = scalar_select %p519, %s27, 1
          %s521 = scalar_lea.vmem %s5, %s520
        $region72: #{weighted_affine_loss.2} parent=67 // pred_fallthru
          _
        // Predicated region
        $region73: #{weighted_affine_loss.2} parent=67 // pred_check
          %p522 = pneg %p209
        $region74: #{weighted_affine_loss.2} parent=67 // pred_check_branch
          %524 = sbr.rel (%p522) target = $region76
        $region75: #{weighted_affine_loss.2} parent=67 // pred_region
          %p525 = scmp.lt.s32.totalorder %s27, 1
          %s526 = scalar_select %p525, %s27, 1
          %s527 = scalar_lea.vmem %s6, %s526
        $region76: #{weighted_affine_loss.2} parent=67 // pred_fallthru
          _
        // Predicated region
        $region77: #{weighted_affine_loss.2} parent=67 // pred_check
          %p528 = pneg %p235
        $region78: #{weighted_affine_loss.2} parent=67 // pred_check_branch
          %530 = sbr.rel (%p528) target = $region80
        $region79: #{weighted_affine_loss.2} parent=67 // pred_region
          %p531 = scmp.lt.s32.totalorder %s27, 1
          %s532 = scalar_select %p531, %s27, 1
          %s533 = scalar_lea.vmem %s7, %s532
        $region80: #{weighted_affine_loss.2} parent=67 // pred_fallthru
          _
      $region68: #{weighted_affine_loss.2} parent=5 // pred_fallthru
        _
    $region6: #{weighted_affine_loss.2} parent=1 // loop_footer
      %s20 = sadd.s32 1, %s16
    $region7: #{weighted_affine_loss.2} parent=1 // loop_footer_branch
      %15 = sbr.rel target = $region3
    $region8: #{weighted_affine_loss.2} parent=1 // loop_exit
      _
    %534 = vsyncpa [#allocation3], 1
    %s535 = scalar_lea.sflag [#allocation3], 1
    %536 = vsyncpa %s535, 1
    %537 = vsyncpa [#allocation5], 1

// kernel: weighted_affine_loss.3
$region0: #{weighted_affine_loss.3}
  #allocation0 [shape = 'u32[]', space=smem, size = 0x4, offset = 0x4, fixed_abs, tag = 'smem constant byte address 0x4 - core index']
  #allocation1 [shape = 'u32[72,128]{1,0:T(1,128)}', space=vmem, size = 0x9000, scoped, tag = 'internal scratch']
  %s0 = inlined_call_operand.vmem [shape: f32[2], index: 0, kind: input, shape index: {}]
  %s1 = inlined_call_operand.vmem [shape: f32[2], index: 1, kind: input, shape index: {}]
  %s2 = inlined_call_operand.vmem [shape: f32[2], index: 2, kind: input, shape index: {}]
  %s3 = inlined_call_operand.vmem [shape: f32[2], index: 3, kind: input, shape index: {}]
  %s4 = inlined_call_operand.vmem [shape: f32[2,16,16], index: 4, kind: input, shape index: {}]
  %s5 = inlined_call_operand.vmem [shape: f32[2,16,16], index: 5, kind: input, shape index: {}]
  %s6 = inlined_call_operand.vmem [shape: f32[2,16,16], index: 6, kind: input, shape index: {}]
  %s7 = inlined_call_operand.vmem [shape: f32[2,16,16], index: 7, kind: input, shape index: {}]
  %s8 = inlined_call_operand.vmem [shape: f32[2,1,1], index: 8, kind: output, shape index: {0}]
  %s9 = inlined_call_operand.vmem [shape: f32[2,1,1], index: 9, kind: output, shape index: {1}]
  %s10 = inlined_call_operand.vmem [shape: f32[2,1,1], index: 10, kind: output, shape index: {2}]
  %s11 = inlined_call_operand.vmem [shape: f32[2,1,1], index: 11, kind: output, shape index: {3}]
  %s12 = inlined_call_operand.vmem [shape: f32[2,1,1], index: 12, kind: output, shape index: {4}]
  %s13 = inlined_call_operand.vmem [shape: f32[2,1,1], index: 13, kind: output, shape index: {5}]
  %s14 = inlined_call_operand.vmem [shape: f32[2,1,1], index: 14, kind: output, shape index: {6}]
  %s15 = inlined_call_operand.vmem [shape: f32[2,1,1], index: 15, kind: output, shape index: {7}]
  %s16 = inlined_call_operand.vmem [shape: f32[2,1,1], index: 16, kind: output, shape index: {8}]
  %17 = xla_tuple %s8, %s9, %s10, %s11, %s12, %s13, %s14, %s15, %s16
  %s18 = sld [smem:[#allocation0]]
  $region145: #{weighted_affine_loss.3} parent=0
    _
  %s20 = ssub.s32 1, %s18
  %s21 = scalar_select 0, %s20, %s18
  $region1: #{weighted_affine_loss.3} parent=0
    #allocation2 [shape = 'u8[512]{0}', space=smem, size = 0x200, scoped, tag = 'input window, operand 0, single buffered']
    #allocation3 [shape = 's32[2]{0}', space=sflag, size = 0x8, scoped, tag = 'scoped memory for weighted_affine_loss.3']
    #allocation4 [shape = 'u8[512]{0}', space=smem, size = 0x200, scoped, tag = 'input window, operand 1, single buffered']
    #allocation5 [shape = 's32[1]{0}', space=sflag, size = 0x4, scoped, tag = 'scoped memory for weighted_affine_loss.3']
    #allocation6 [shape = 'u8[512]{0}', space=smem, size = 0x200, scoped, tag = 'input window, operand 2, single buffered']
    #allocation7 [shape = 'u8[512]{0}', space=smem, size = 0x200, scoped, tag = 'input window, operand 3, single buffered']
    #allocation8 [shape = 's32[1]{0}', space=sflag, size = 0x4, scoped, tag = 'scoped memory for weighted_affine_loss.3']
    %22 = vsyncpa [#allocation3], 0
    %23 = vsyncpa [#allocation5], 0
    %24 = vsyncpa [#allocation8], 0
    loop: start=0, step=1, limit=4
    $region2: #{weighted_affine_loss.3} parent=1 // loop_pre_header
      _
    $region3: #{weighted_affine_loss.3} parent=1 // loop_header
      %s26 = sphi 0, %s30
      %p27 = scmp.ge.s32.totalorder %s26, 4
      %s34 = sphi 0, %s34
      %s36 = sphi 0, %s34
      %s37 = sphi 0, %s36
      %s51 = sphi 0, %s37
      %s55 = sphi 0, %s55
      %s57 = sphi 0, %s55
      %s58 = sphi 0, %s57
      %s72 = sphi 0, %s58
      %s76 = sphi 0, %s76
      %s78 = sphi 0, %s76
      %s79 = sphi 0, %s78
      %s93 = sphi 0, %s79
      %s97 = sphi 0, %s97
      %s99 = sphi 0, %s97
      %s100 = sphi 0, %s99
      %s114 = sphi 0, %s100
      %s120 = sphi 0, %s122
      %s123 = sphi 0, %s120
      %s124 = sphi 0, %s123
      %s140 = sphi 0, %s124
      %s146 = sphi 0, %s148
      %s149 = sphi 0, %s146
      %s150 = sphi 0, %s149
      %s166 = sphi 0, %s150
      %s172 = sphi 0, %s174
      %s175 = sphi 0, %s172
      %s176 = sphi 0, %s175
      %s192 = sphi 0, %s176
      %s198 = sphi 0, %s200
      %s201 = sphi 0, %s198
      %s202 = sphi 0, %s201
      %s218 = sphi 0, %s202
      %s224 = sphi 0, %s226
      %s227 = sphi 0, %s224
      %s228 = sphi 0, %s227
      %s244 = sphi 0, %s228
      %s250 = sphi 0, %s252
      %s253 = sphi 0, %s250
      %s254 = sphi 0, %s253
      %s270 = sphi 0, %s254
      %s276 = sphi 0, %s278
      %s279 = sphi 0, %s276
      %s280 = sphi 0, %s279
      %s296 = sphi 0, %s280
      %s302 = sphi 0, %s304
      %s305 = sphi 0, %s302
      %s306 = sphi 0, %s305
      %s322 = sphi 0, %s306
      %s328 = sphi 0, %s330
      %s331 = sphi 0, %s328
      %s332 = sphi 0, %s331
      %s348 = sphi 0, %s332
      %s354 = sphi 0, %s356
      %s357 = sphi 0, %s354
      %s358 = sphi 0, %s357
      %s374 = sphi 0, %s358
      %s380 = sphi 0, %s382
      %s383 = sphi 0, %s380
      %s384 = sphi 0, %s383
      %s400 = sphi 0, %s384
      %s406 = sphi 0, %s408
      %s409 = sphi 0, %s406
      %s410 = sphi 0, %s409
      %s426 = sphi 0, %s410
      %s432 = sphi 0, %s434
      %s435 = sphi 0, %s432
      %s436 = sphi 0, %s435
      %s452 = sphi 0, %s436
    $region4: #{weighted_affine_loss.3} parent=1 // loop_header_branch
      %29 = sbr.rel (%p27) target = $region8
    $region5: #{weighted_affine_loss.3} parent=1 // loop_body
      %s31 = ssub.s32 %s26, 1
      %s32 = ssub.s32 %s26, 2
      %s33 = sadd.s32 %s26, 1
      %s35 = sadd.s32 %s34, 1
      %p38 = scmp.eq.s32.totalorder %s26, 1
      %p39 = scmp.ne.s32.totalorder %s34, %s36
      %p40 = scmp.eq.s32.totalorder %s26, 0
      %p41 = por %p39, %p40
      %p42 = scmp.ne.s32.totalorder %s34, %s36
      %p43 = scmp.eq.s32.totalorder %s31, 1
      %p44 = por %p42, %p43
      %p45 = scmp.ne.s32.totalorder %s36, %s37
      %p46 = scmp.eq.s32.totalorder %s31, 0
      %p47 = por %p45, %p46
      %p48 = scmp.ne.s32.totalorder %s36, %s37
      %p49 = scmp.eq.s32.totalorder %s32, 1
      %p50 = por %p48, %p49
      %p52 = scmp.ne.s32.totalorder %s37, %s51
      %p53 = scmp.eq.s32.totalorder %s32, 0
      %p54 = por %p52, %p53
      %s56 = sadd.s32 %s55, 1
      %p59 = scmp.eq.s32.totalorder %s26, 1
      %p60 = scmp.ne.s32.totalorder %s55, %s57
      %p61 = scmp.eq.s32.totalorder %s26, 0
      %p62 = por %p60, %p61
      %p63 = scmp.ne.s32.totalorder %s55, %s57
      %p64 = scmp.eq.s32.totalorder %s31, 1
      %p65 = por %p63, %p64
      %p66 = scmp.ne.s32.totalorder %s57, %s58
      %p67 = scmp.eq.s32.totalorder %s31, 0
      %p68 = por %p66, %p67
      %p69 = scmp.ne.s32.totalorder %s57, %s58
      %p70 = scmp.eq.s32.totalorder %s32, 1
      %p71 = por %p69, %p70
      %p73 = scmp.ne.s32.totalorder %s58, %s72
      %p74 = scmp.eq.s32.totalorder %s32, 0
      %p75 = por %p73, %p74
      %s77 = sadd.s32 %s76, 1
      %p80 = scmp.eq.s32.totalorder %s26, 1
      %p81 = scmp.ne.s32.totalorder %s76, %s78
      %p82 = scmp.eq.s32.totalorder %s26, 0
      %p83 = por %p81, %p82
      %p84 = scmp.ne.s32.totalorder %s76, %s78
      %p85 = scmp.eq.s32.totalorder %s31, 1
      %p86 = por %p84, %p85
      %p87 = scmp.ne.s32.totalorder %s78, %s79
      %p88 = scmp.eq.s32.totalorder %s31, 0
      %p89 = por %p87, %p88
      %p90 = scmp.ne.s32.totalorder %s78, %s79
      %p91 = scmp.eq.s32.totalorder %s32, 1
      %p92 = por %p90, %p91
      %p94 = scmp.ne.s32.totalorder %s79, %s93
      %p95 = scmp.eq.s32.totalorder %s32, 0
      %p96 = por %p94, %p95
      %s98 = sadd.s32 %s97, 1
      %p101 = scmp.eq.s32.totalorder %s26, 1
      %p102 = scmp.ne.s32.totalorder %s97, %s99
      %p103 = scmp.eq.s32.totalorder %s26, 0
      %p104 = por %p102, %p103
      %p105 = scmp.ne.s32.totalorder %s97, %s99
      %p106 = scmp.eq.s32.totalorder %s31, 1
      %p107 = por %p105, %p106
      %p108 = scmp.ne.s32.totalorder %s99, %s100
      %p109 = scmp.eq.s32.totalorder %s31, 0
      %p110 = por %p108, %p109
      %p111 = scmp.ne.s32.totalorder %s99, %s100
      %p112 = scmp.eq.s32.totalorder %s32, 1
      %p113 = por %p111, %p112
      %p115 = scmp.ne.s32.totalorder %s100, %s114
      %p116 = scmp.eq.s32.totalorder %s32, 0
      %p117 = por %p115, %p116
      %s118 = ssub.s32 %s26, %s33
      %p119 = scmp.eq.s32.totalorder %s118, 0
      %s121 = sadd.s32 %s120, 1
      %s122 = scalar_select %p119, %s120, %s121
      %p125 = pneg %p119
      %p126 = scmp.eq.s32.totalorder %s26, 1
      %p127 = por %p125, %p126
      %p128 = scmp.ne.s32.totalorder %s120, %s123
      %p129 = scmp.eq.s32.totalorder %s26, 0
      %p130 = por %p128, %p129
      %p131 = scmp.ne.s32.totalorder %s120, %s123
      %p132 = scmp.eq.s32.totalorder %s31, 1
      %p133 = por %p131, %p132
      %p134 = scmp.ne.s32.totalorder %s123, %s124
      %p135 = scmp.eq.s32.totalorder %s31, 0
      %p136 = por %p134, %p135
      %p137 = scmp.ne.s32.totalorder %s123, %s124
      %p138 = scmp.eq.s32.totalorder %s32, 1
      %p139 = por %p137, %p138
      %p141 = scmp.ne.s32.totalorder %s124, %s140
      %p142 = scmp.eq.s32.totalorder %s32, 0
      %p143 = por %p141, %p142
      %s144 = ssub.s32 %s26, %s33
      %p145 = scmp.eq.s32.totalorder %s144, 0
      %s147 = sadd.s32 %s146, 1
      %s148 = scalar_select %p145, %s146, %s147
      %p151 = pneg %p145
      %p152 = scmp.eq.s32.totalorder %s26, 1
      %p153 = por %p151, %p152
      %p154 = scmp.ne.s32.totalorder %s146, %s149
      %p155 = scmp.eq.s32.totalorder %s26, 0
      %p156 = por %p154, %p155
      %p157 = scmp.ne.s32.totalorder %s146, %s149
      %p158 = scmp.eq.s32.totalorder %s31, 1
      %p159 = por %p157, %p158
      %p160 = scmp.ne.s32.totalorder %s149, %s150
      %p161 = scmp.eq.s32.totalorder %s31, 0
      %p162 = por %p160, %p161
      %p163 = scmp.ne.s32.totalorder %s149, %s150
      %p164 = scmp.eq.s32.totalorder %s32, 1
      %p165 = por %p163, %p164
      %p167 = scmp.ne.s32.totalorder %s150, %s166
      %p168 = scmp.eq.s32.totalorder %s32, 0
      %p169 = por %p167, %p168
      %s170 = ssub.s32 %s26, %s33
      %p171 = scmp.eq.s32.totalorder %s170, 0
      %s173 = sadd.s32 %s172, 1
      %s174 = scalar_select %p171, %s172, %s173
      %p177 = pneg %p171
      %p178 = scmp.eq.s32.totalorder %s26, 1
      %p179 = por %p177, %p178
      %p180 = scmp.ne.s32.totalorder %s172, %s175
      %p181 = scmp.eq.s32.totalorder %s26, 0
      %p182 = por %p180, %p181
      %p183 = scmp.ne.s32.totalorder %s172, %s175
      %p184 = scmp.eq.s32.totalorder %s31, 1
      %p185 = por %p183, %p184
      %p186 = scmp.ne.s32.totalorder %s175, %s176
      %p187 = scmp.eq.s32.totalorder %s31, 0
      %p188 = por %p186, %p187
      %p189 = scmp.ne.s32.totalorder %s175, %s176
      %p190 = scmp.eq.s32.totalorder %s32, 1
      %p191 = por %p189, %p190
      %p193 = scmp.ne.s32.totalorder %s176, %s192
      %p194 = scmp.eq.s32.totalorder %s32, 0
      %p195 = por %p193, %p194
      %s196 = ssub.s32 %s26, %s33
      %p197 = scmp.eq.s32.totalorder %s196, 0
      %s199 = sadd.s32 %s198, 1
      %s200 = scalar_select %p197, %s198, %s199
      %p203 = pneg %p197
      %p204 = scmp.eq.s32.totalorder %s26, 1
      %p205 = por %p203, %p204
      %p206 = scmp.ne.s32.totalorder %s198, %s201
      %p207 = scmp.eq.s32.totalorder %s26, 0
      %p208 = por %p206, %p207
      %p209 = scmp.ne.s32.totalorder %s198, %s201
      %p210 = scmp.eq.s32.totalorder %s31, 1
      %p211 = por %p209, %p210
      %p212 = scmp.ne.s32.totalorder %s201, %s202
      %p213 = scmp.eq.s32.totalorder %s31, 0
      %p214 = por %p212, %p213
      %p215 = scmp.ne.s32.totalorder %s201, %s202
      %p216 = scmp.eq.s32.totalorder %s32, 1
      %p217 = por %p215, %p216
      %p219 = scmp.ne.s32.totalorder %s202, %s218
      %p220 = scmp.eq.s32.totalorder %s32, 0
      %p221 = por %p219, %p220
      %s222 = ssub.s32 %s26, %s33
      %p223 = scmp.eq.s32.totalorder %s222, 0
      %s225 = sadd.s32 %s224, 1
      %s226 = scalar_select %p223, %s224, %s225
      %p229 = pneg %p223
      %p230 = scmp.eq.s32.totalorder %s26, 1
      %p231 = por %p229, %p230
      %p232 = scmp.ne.s32.totalorder %s224, %s227
      %p233 = scmp.eq.s32.totalorder %s26, 0
      %p234 = por %p232, %p233
      %p235 = scmp.ne.s32.totalorder %s224, %s227
      %p236 = scmp.eq.s32.totalorder %s31, 1
      %p237 = por %p235, %p236
      %p238 = scmp.ne.s32.totalorder %s227, %s228
      %p239 = scmp.eq.s32.totalorder %s31, 0
      %p240 = por %p238, %p239
      %p241 = scmp.ne.s32.totalorder %s227, %s228
      %p242 = scmp.eq.s32.totalorder %s32, 1
      %p243 = por %p241, %p242
      %p245 = scmp.ne.s32.totalorder %s228, %s244
      %p246 = scmp.eq.s32.totalorder %s32, 0
      %p247 = por %p245, %p246
      %s248 = ssub.s32 %s26, %s33
      %p249 = scmp.eq.s32.totalorder %s248, 0
      %s251 = sadd.s32 %s250, 1
      %s252 = scalar_select %p249, %s250, %s251
      %p255 = pneg %p249
      %p256 = scmp.eq.s32.totalorder %s26, 1
      %p257 = por %p255, %p256
      %p258 = scmp.ne.s32.totalorder %s250, %s253
      %p259 = scmp.eq.s32.totalorder %s26, 0
      %p260 = por %p258, %p259
      %p261 = scmp.ne.s32.totalorder %s250, %s253
      %p262 = scmp.eq.s32.totalorder %s31, 1
      %p263 = por %p261, %p262
      %p264 = scmp.ne.s32.totalorder %s253, %s254
      %p265 = scmp.eq.s32.totalorder %s31, 0
      %p266 = por %p264, %p265
      %p267 = scmp.ne.s32.totalorder %s253, %s254
      %p268 = scmp.eq.s32.totalorder %s32, 1
      %p269 = por %p267, %p268
      %p271 = scmp.ne.s32.totalorder %s254, %s270
      %p272 = scmp.eq.s32.totalorder %s32, 0
      %p273 = por %p271, %p272
      %s274 = ssub.s32 %s26, %s33
      %p275 = scmp.eq.s32.totalorder %s274, 0
      %s277 = sadd.s32 %s276, 1
      %s278 = scalar_select %p275, %s276, %s277
      %p281 = pneg %p275
      %p282 = scmp.eq.s32.totalorder %s26, 1
      %p283 = por %p281, %p282
      %p284 = scmp.ne.s32.totalorder %s276, %s279
      %p285 = scmp.eq.s32.totalorder %s26, 0
      %p286 = por %p284, %p285
      %p287 = scmp.ne.s32.totalorder %s276, %s279
      %p288 = scmp.eq.s32.totalorder %s31, 1
      %p289 = por %p287, %p288
      %p290 = scmp.ne.s32.totalorder %s279, %s280
      %p291 = scmp.eq.s32.totalorder %s31, 0
      %p292 = por %p290, %p291
      %p293 = scmp.ne.s32.totalorder %s279, %s280
      %p294 = scmp.eq.s32.totalorder %s32, 1
      %p295 = por %p293, %p294
      %p297 = scmp.ne.s32.totalorder %s280, %s296
      %p298 = scmp.eq.s32.totalorder %s32, 0
      %p299 = por %p297, %p298
      %s300 = ssub.s32 %s26, %s33
      %p301 = scmp.eq.s32.totalorder %s300, 0
      %s303 = sadd.s32 %s302, 1
      %s304 = scalar_select %p301, %s302, %s303
      %p307 = pneg %p301
      %p308 = scmp.eq.s32.totalorder %s26, 1
      %p309 = por %p307, %p308
      %p310 = scmp.ne.s32.totalorder %s302, %s305
      %p311 = scmp.eq.s32.totalorder %s26, 0
      %p312 = por %p310, %p311
      %p313 = scmp.ne.s32.totalorder %s302, %s305
      %p314 = scmp.eq.s32.totalorder %s31, 1
      %p315 = por %p313, %p314
      %p316 = scmp.ne.s32.totalorder %s305, %s306
      %p317 = scmp.eq.s32.totalorder %s31, 0
      %p318 = por %p316, %p317
      %p319 = scmp.ne.s32.totalorder %s305, %s306
      %p320 = scmp.eq.s32.totalorder %s32, 1
      %p321 = por %p319, %p320
      %p323 = scmp.ne.s32.totalorder %s306, %s322
      %p324 = scmp.eq.s32.totalorder %s32, 0
      %p325 = por %p323, %p324
      %s326 = ssub.s32 %s26, %s33
      %p327 = scmp.eq.s32.totalorder %s326, 0
      %s329 = sadd.s32 %s328, 1
      %s330 = scalar_select %p327, %s328, %s329
      %p333 = pneg %p327
      %p334 = scmp.eq.s32.totalorder %s26, 1
      %p335 = por %p333, %p334
      %p336 = scmp.ne.s32.totalorder %s328, %s331
      %p337 = scmp.eq.s32.totalorder %s26, 0
      %p338 = por %p336, %p337
      %p339 = scmp.ne.s32.totalorder %s328, %s331
      %p340 = scmp.eq.s32.totalorder %s31, 1
      %p341 = por %p339, %p340
      %p342 = scmp.ne.s32.totalorder %s331, %s332
      %p343 = scmp.eq.s32.totalorder %s31, 0
      %p344 = por %p342, %p343
      %p345 = scmp.ne.s32.totalorder %s331, %s332
      %p346 = scmp.eq.s32.totalorder %s32, 1
      %p347 = por %p345, %p346
      %p349 = scmp.ne.s32.totalorder %s332, %s348
      %p350 = scmp.eq.s32.totalorder %s32, 0
      %p351 = por %p349, %p350
      %s352 = ssub.s32 %s26, %s33
      %p353 = scmp.eq.s32.totalorder %s352, 0
      %s355 = sadd.s32 %s354, 1
      %s356 = scalar_select %p353, %s354, %s355
      %p359 = pneg %p353
      %p360 = scmp.eq.s32.totalorder %s26, 1
      %p361 = por %p359, %p360
      %p362 = scmp.ne.s32.totalorder %s354, %s357
      %p363 = scmp.eq.s32.totalorder %s26, 0
      %p364 = por %p362, %p363
      %p365 = scmp.ne.s32.totalorder %s354, %s357
      %p366 = scmp.eq.s32.totalorder %s31, 1
      %p367 = por %p365, %p366
      %p368 = scmp.ne.s32.totalorder %s357, %s358
      %p369 = scmp.eq.s32.totalorder %s31, 0
      %p370 = por %p368, %p369
      %p371 = scmp.ne.s32.totalorder %s357, %s358
      %p372 = scmp.eq.s32.totalorder %s32, 1
      %p373 = por %p371, %p372
      %p375 = scmp.ne.s32.totalorder %s358, %s374
      %p376 = scmp.eq.s32.totalorder %s32, 0
      %p377 = por %p375, %p376
      %s378 = ssub.s32 %s26, %s33
      %p379 = scmp.eq.s32.totalorder %s378, 0
      %s381 = sadd.s32 %s380, 1
      %s382 = scalar_select %p379, %s380, %s381
      %p385 = pneg %p379
      %p386 = scmp.eq.s32.totalorder %s26, 1
      %p387 = por %p385, %p386
      %p388 = scmp.ne.s32.totalorder %s380, %s383
      %p389 = scmp.eq.s32.totalorder %s26, 0
      %p390 = por %p388, %p389
      %p391 = scmp.ne.s32.totalorder %s380, %s383
      %p392 = scmp.eq.s32.totalorder %s31, 1
      %p393 = por %p391, %p392
      %p394 = scmp.ne.s32.totalorder %s383, %s384
      %p395 = scmp.eq.s32.totalorder %s31, 0
      %p396 = por %p394, %p395
      %p397 = scmp.ne.s32.totalorder %s383, %s384
      %p398 = scmp.eq.s32.totalorder %s32, 1
      %p399 = por %p397, %p398
      %p401 = scmp.ne.s32.totalorder %s384, %s400
      %p402 = scmp.eq.s32.totalorder %s32, 0
      %p403 = por %p401, %p402
      %s404 = ssub.s32 %s26, %s33
      %p405 = scmp.eq.s32.totalorder %s404, 0
      %s407 = sadd.s32 %s406, 1
      %s408 = scalar_select %p405, %s406, %s407
      %p411 = pneg %p405
      %p412 = scmp.eq.s32.totalorder %s26, 1
      %p413 = por %p411, %p412
      %p414 = scmp.ne.s32.totalorder %s406, %s409
      %p415 = scmp.eq.s32.totalorder %s26, 0
      %p416 = por %p414, %p415
      %p417 = scmp.ne.s32.totalorder %s406, %s409
      %p418 = scmp.eq.s32.totalorder %s31, 1
      %p419 = por %p417, %p418
      %p420 = scmp.ne.s32.totalorder %s409, %s410
      %p421 = scmp.eq.s32.totalorder %s31, 0
      %p422 = por %p420, %p421
      %p423 = scmp.ne.s32.totalorder %s409, %s410
      %p424 = scmp.eq.s32.totalorder %s32, 1
      %p425 = por %p423, %p424
      %p427 = scmp.ne.s32.totalorder %s410, %s426
      %p428 = scmp.eq.s32.totalorder %s32, 0
      %p429 = por %p427, %p428
      %s430 = ssub.s32 %s26, %s33
      %p431 = scmp.eq.s32.totalorder %s430, 0
      %s433 = sadd.s32 %s432, 1
      %s434 = scalar_select %p431, %s432, %s433
      %p437 = pneg %p431
      %p438 = scmp.eq.s32.totalorder %s26, 1
      %p439 = por %p437, %p438
      %p440 = scmp.ne.s32.totalorder %s432, %s435
      %p441 = scmp.eq.s32.totalorder %s26, 0
      %p442 = por %p440, %p441
      %p443 = scmp.ne.s32.totalorder %s432, %s435
      %p444 = scmp.eq.s32.totalorder %s31, 1
      %p445 = por %p443, %p444
      %p446 = scmp.ne.s32.totalorder %s435, %s436
      %p447 = scmp.eq.s32.totalorder %s31, 0
      %p448 = por %p446, %p447
      %p449 = scmp.ne.s32.totalorder %s435, %s436
      %p450 = scmp.eq.s32.totalorder %s32, 1
      %p451 = por %p449, %p450
      %p453 = scmp.ne.s32.totalorder %s436, %s452
      %p454 = scmp.eq.s32.totalorder %s32, 0
      %p455 = por %p453, %p454
      %p456 = scmp.le.s32.totalorder 1, %s26
      %p457 = scmp.lt.s32.totalorder %s26, 3
      %p458 = pnand %p456, %p457
      %p459 = pneg %p458
      // Predicated region
      $region9: #{weighted_affine_loss.3} parent=5 // pred_check
        _
      $region10: #{weighted_affine_loss.3} parent=5 // pred_check_branch
        %461 = sbr.rel (%p458) target = $region12
      $region11: #{weighted_affine_loss.3} parent=5 // pred_region
        %s462 = ssub.s32 %s26, 1
        // Predicated region
        $region13: #{weighted_affine_loss.3} parent=11 // pred_check
          %p463 = pneg %p47
        $region14: #{weighted_affine_loss.3} parent=11 // pred_check_branch
          %465 = sbr.rel (%p463) target = $region16
        $region15: #{weighted_affine_loss.3} parent=11 // pred_region
          %467 = vsyncadd [#allocation3], 0
          %s469 = sshll.u32 %s0, 4
          %s470 = int_to_ptr.vmem [resolvable:$true] %s469
          %472 = dma.vmem_to_smem %s470, 16, [#allocation2], [#allocation3]
        $region16: #{weighted_affine_loss.3} parent=11 // pred_fallthru
          _
        // Predicated region
        $region17: #{weighted_affine_loss.3} parent=11 // pred_check
          %p473 = pneg %p68
        $region18: #{weighted_affine_loss.3} parent=11 // pred_check_branch
          %475 = sbr.rel (%p473) target = $region20
        $region19: #{weighted_affine_loss.3} parent=11 // pred_region
          %477 = vsyncadd [#allocation5], 0
          %s479 = sshll.u32 %s1, 4
          %s480 = int_to_ptr.vmem [resolvable:$true] %s479
          %482 = dma.vmem_to_smem %s480, 16, [#allocation4], [#allocation5]
        $region20: #{weighted_affine_loss.3} parent=11 // pred_fallthru
          _
        // Predicated region
        $region21: #{weighted_affine_loss.3} parent=11 // pred_check
          %p483 = pneg %p89
        $region22: #{weighted_affine_loss.3} parent=11 // pred_check_branch
          %485 = sbr.rel (%p483) target = $region24
        $region23: #{weighted_affine_loss.3} parent=11 // pred_region
          %487 = vsyncadd [#allocation5], 0
          %s489 = sshll.u32 %s2, 4
          %s490 = int_to_ptr.vmem [resolvable:$true] %s489
          %492 = dma.vmem_to_smem %s490, 16, [#allocation6], [#allocation5]
        $region24: #{weighted_affine_loss.3} parent=11 // pred_fallthru
          _
        // Predicated region
        $region25: #{weighted_affine_loss.3} parent=11 // pred_check
          %p493 = pneg %p110
        $region26: #{weighted_affine_loss.3} parent=11 // pred_check_branch
          %495 = sbr.rel (%p493) target = $region28
        $region27: #{weighted_affine_loss.3} parent=11 // pred_region
          %497 = vsyncadd [#allocation8], 0
          %s499 = sshll.u32 %s3, 4
          %s500 = int_to_ptr.vmem [resolvable:$true] %s499
          %502 = dma.vmem_to_smem %s500, 16, [#allocation7], [#allocation8]
        $region28: #{weighted_affine_loss.3} parent=11 // pred_fallthru
          _
      $region12: #{weighted_affine_loss.3} parent=5 // pred_fallthru
        _
      %p503 = scmp.lt.s32.totalorder %s26, 2
      // Predicated region
      $region29: #{weighted_affine_loss.3} parent=5 // pred_check
        %p504 = pneg %p503
      $region30: #{weighted_affine_loss.3} parent=5 // pred_check_branch
        %506 = sbr.rel (%p504) target = $region32
      $region31: #{weighted_affine_loss.3} parent=5 // pred_region
        // Predicated region
        $region33: #{weighted_affine_loss.3} parent=31 // pred_check
          %p507 = pneg %p130
        $region34: #{weighted_affine_loss.3} parent=31 // pred_check_branch
          %509 = sbr.rel (%p507) target = $region36
        $region35: #{weighted_affine_loss.3} parent=31 // pred_region
          %p510 = scmp.lt.s32.totalorder %s26, 1
          %s511 = scalar_select %p510, %s26, 1
          %s512 = smul.addr %s511, 2
          %s513 = smul.addr %s512, 8
          %s514 = scalar_lea.vmem %s4, %s513
        $region36: #{weighted_affine_loss.3} parent=31 // pred_fallthru
          _
        // Predicated region
        $region37: #{weighted_affine_loss.3} parent=31 // pred_check
          %p515 = pneg %p156
        $region38: #{weighted_affine_loss.3} parent=31 // pred_check_branch
          %517 = sbr.rel (%p515) target = $region40
        $region39: #{weighted_affine_loss.3} parent=31 // pred_region
          %p518 = scmp.lt.s32.totalorder %s26, 1
          %s519 = scalar_select %p518, %s26, 1
          %s520 = smul.addr %s519, 2
          %s521 = smul.addr %s520, 8
          %s522 = scalar_lea.vmem %s5, %s521
        $region40: #{weighted_affine_loss.3} parent=31 // pred_fallthru
          _
        // Predicated region
        $region41: #{weighted_affine_loss.3} parent=31 // pred_check
          %p523 = pneg %p182
        $region42: #{weighted_affine_loss.3} parent=31 // pred_check_branch
          %525 = sbr.rel (%p523) target = $region44
        $region43: #{weighted_affine_loss.3} parent=31 // pred_region
          %p526 = scmp.lt.s32.totalorder %s26, 1
          %s527 = scalar_select %p526, %s26, 1
          %s528 = smul.addr %s527, 2
          %s529 = smul.addr %s528, 8
          %s530 = scalar_lea.vmem %s6, %s529
        $region44: #{weighted_affine_loss.3} parent=31 // pred_fallthru
          _
        // Predicated region
        $region45: #{weighted_affine_loss.3} parent=31 // pred_check
          %p531 = pneg %p208
        $region46: #{weighted_affine_loss.3} parent=31 // pred_check_branch
          %533 = sbr.rel (%p531) target = $region48
        $region47: #{weighted_affine_loss.3} parent=31 // pred_region
          %p534 = scmp.lt.s32.totalorder %s26, 1
          %s535 = scalar_select %p534, %s26, 1
          %s536 = smul.addr %s535, 2
          %s537 = smul.addr %s536, 8
          %s538 = scalar_lea.vmem %s7, %s537
        $region48: #{weighted_affine_loss.3} parent=31 // pred_fallthru
          _
      $region32: #{weighted_affine_loss.3} parent=5 // pred_fallthru
        _
      %p539 = scmp.le.s32.totalorder 1, %s26
      %p540 = scmp.lt.s32.totalorder %s26, 3
      %p541 = pnand %p539, %p540
      %p542 = pneg %p541
      // Predicated region
      $region49: #{weighted_affine_loss.3} parent=5 // pred_check
        _
      $region50: #{weighted_affine_loss.3} parent=5 // pred_check_branch
        %544 = sbr.rel (%p541) target = $region52
      $region51: #{weighted_affine_loss.3} parent=5 // pred_region
        %s545 = ssub.s32 %s26, 1
        // Predicated region
        $region53: #{weighted_affine_loss.3} parent=51 // pred_check
          %p546 = pneg %p47
        $region54: #{weighted_affine_loss.3} parent=51 // pred_check_branch
          %548 = sbr.rel (%p546) target = $region56
        $region55: #{weighted_affine_loss.3} parent=51 // pred_region
          %550 = dma.done [#allocation3], 16
        $region56: #{weighted_affine_loss.3} parent=51 // pred_fallthru
          _
        // Predicated region
        $region57: #{weighted_affine_loss.3} parent=51 // pred_check
          %p551 = pneg %p68
        $region58: #{weighted_affine_loss.3} parent=51 // pred_check_branch
          %553 = sbr.rel (%p551) target = $region60
        $region59: #{weighted_affine_loss.3} parent=51 // pred_region
          %555 = dma.done [#allocation5], 16
        $region60: #{weighted_affine_loss.3} parent=51 // pred_fallthru
          _
        // Predicated region
        $region61: #{weighted_affine_loss.3} parent=51 // pred_check
          %p556 = pneg %p89
        $region62: #{weighted_affine_loss.3} parent=51 // pred_check_branch
          %558 = sbr.rel (%p556) target = $region64
        $region63: #{weighted_affine_loss.3} parent=51 // pred_region
          %560 = dma.done [#allocation5], 16
        $region64: #{weighted_affine_loss.3} parent=51 // pred_fallthru
          _
        // Predicated region
        $region65: #{weighted_affine_loss.3} parent=51 // pred_check
          %p561 = pneg %p110
        $region66: #{weighted_affine_loss.3} parent=51 // pred_check_branch
          %563 = sbr.rel (%p561) target = $region68
        $region67: #{weighted_affine_loss.3} parent=51 // pred_region
          %565 = dma.done [#allocation8], 16
        $region68: #{weighted_affine_loss.3} parent=51 // pred_fallthru
          _
        %566 = sfence
        %p567 = pneg %p47
        %p568 = pneg %p44
        %p569 = pneg %p68
        %p570 = pneg %p65
        %p571 = pneg %p89
        %p572 = pneg %p86
        %p573 = pneg %p110
        %p574 = pneg %p107
        %p575 = scmp.lt.s32.totalorder %s31, 1
        %s576 = scalar_select %p575, %s31, 1
        %s577 = smul.addr %s576, 2
        %s578 = smul.addr %s577, 8
        %s579 = scalar_lea.vmem %s4, %s578
        %p580 = pneg %p136
        %p581 = pneg %p133
        %p582 = scmp.lt.s32.totalorder %s31, 1
        %s583 = scalar_select %p582, %s31, 1
        %s584 = smul.addr %s583, 2
        %s585 = smul.addr %s584, 8
        %s586 = scalar_lea.vmem %s5, %s585
        %p587 = pneg %p162
        %p588 = pneg %p159
        %p589 = scmp.lt.s32.totalorder %s31, 1
        %s590 = scalar_select %p589, %s31, 1
        %s591 = smul.addr %s590, 2
        %s592 = smul.addr %s591, 8
        %s593 = scalar_lea.vmem %s6, %s592
        %p594 = pneg %p188
        %p595 = pneg %p185
        %p596 = scmp.lt.s32.totalorder %s31, 1
        %s597 = scalar_select %p596, %s31, 1
        %s598 = smul.addr %s597, 2
        %s599 = smul.addr %s598, 8
        %s600 = scalar_lea.vmem %s7, %s599
        %p601 = pneg %p214
        %p602 = pneg %p211
        %p603 = pneg %p240
        %p604 = pneg %p237
        %p605 = scmp.lt.s32.totalorder %s31, 1
        %s606 = scalar_select %p605, %s31, 1
        %s607 = scalar_lea.vmem %s8, %s606
        %p608 = pneg %p266
        %p609 = pneg %p263
        %p610 = scmp.lt.s32.totalorder %s31, 1
        %s611 = scalar_select %p610, %s31, 1
        %s612 = scalar_lea.vmem %s9, %s611
        %p613 = pneg %p292
        %p614 = pneg %p289
        %p615 = scmp.lt.s32.totalorder %s31, 1
        %s616 = scalar_select %p615, %s31, 1
        %s617 = scalar_lea.vmem %s10, %s616
        %p618 = pneg %p318
        %p619 = pneg %p315
        %p620 = scmp.lt.s32.totalorder %s31, 1
        %s621 = scalar_select %p620, %s31, 1
        %s622 = scalar_lea.vmem %s11, %s621
        %p623 = pneg %p344
        %p624 = pneg %p341
        %p625 = scmp.lt.s32.totalorder %s31, 1
        %s626 = scalar_select %p625, %s31, 1
        %s627 = scalar_lea.vmem %s12, %s626
        %p628 = pneg %p370
        %p629 = pneg %p367
        %p630 = scmp.lt.s32.totalorder %s31, 1
        %s631 = scalar_select %p630, %s31, 1
        %s632 = scalar_lea.vmem %s13, %s631
        %p633 = pneg %p396
        %p634 = pneg %p393
        %p635 = scmp.lt.s32.totalorder %s31, 1
        %s636 = scalar_select %p635, %s31, 1
        %s637 = scalar_lea.vmem %s14, %s636
        %p638 = pneg %p422
        %p639 = pneg %p419
        %p640 = scmp.lt.s32.totalorder %s31, 1
        %s641 = scalar_select %p640, %s31, 1
        %s642 = scalar_lea.vmem %s15, %s641
        %p643 = pneg %p448
        %p644 = pneg %p445
        %p645 = scmp.lt.s32.totalorder %s31, 1
        %s646 = scalar_select %p645, %s31, 1
        %s647 = scalar_lea.vmem %s16, %s646
        %p648 = scmp.lt.s32.totalorder %s31, 1
        %s649 = scalar_select %p648, %s31, 1
        %s650 = smul.addr %s649, 2
        %s651 = smul.addr %s650, 8
        %s652 = scalar_lea.vmem %s4, %s651
        %p653 = scmp.lt.s32.totalorder %s31, 1
        %s654 = scalar_select %p653, %s31, 1
        %s655 = smul.addr %s654, 2
        %s656 = smul.addr %s655, 8
        %s657 = scalar_lea.vmem %s5, %s656
        %p658 = scmp.lt.s32.totalorder %s31, 1
        %s659 = scalar_select %p658, %s31, 1
        %s660 = smul.addr %s659, 2
        %s661 = smul.addr %s660, 8
        %s662 = scalar_lea.vmem %s6, %s661
        %p663 = scmp.lt.s32.totalorder %s31, 1
        %s664 = scalar_select %p663, %s31, 1
        %s665 = smul.addr %s664, 2
        %s666 = smul.addr %s665, 8
        %s667 = scalar_lea.vmem %s7, %s666
        %p668 = scmp.lt.s32.totalorder %s31, 1
        %s669 = scalar_select %p668, %s31, 1
        %s670 = scalar_lea.vmem %s8, %s669
        %p671 = scmp.lt.s32.totalorder %s31, 1
        %s672 = scalar_select %p671, %s31, 1
        %s673 = scalar_lea.vmem %s9, %s672
        %p674 = scmp.lt.s32.totalorder %s31, 1
        %s675 = scalar_select %p674, %s31, 1
        %s676 = scalar_lea.vmem %s10, %s675
        %p677 = scmp.lt.s32.totalorder %s31, 1
        %s678 = scalar_select %p677, %s31, 1
        %s679 = scalar_lea.vmem %s11, %s678
        %p680 = scmp.lt.s32.totalorder %s31, 1
        %s681 = scalar_select %p680, %s31, 1
        %s682 = scalar_lea.vmem %s12, %s681
        %p683 = scmp.lt.s32.totalorder %s31, 1
        %s684 = scalar_select %p683, %s31, 1
        %s685 = scalar_lea.vmem %s13, %s684
        %p686 = scmp.lt.s32.totalorder %s31, 1
        %s687 = scalar_select %p686, %s31, 1
        %s688 = scalar_lea.vmem %s14, %s687
        %p689 = scmp.lt.s32.totalorder %s31, 1
        %s690 = scalar_select %p689, %s31, 1
        %s691 = scalar_lea.vmem %s15, %s690
        %p692 = scmp.lt.s32.totalorder %s31, 1
        %s693 = scalar_select %p692, %s31, 1
        %s694 = scalar_lea.vmem %s16, %s693
        %v695 = vld [vmem:[%s662] sm:$0xff]
        %v696 = vld [vmem:[%s662 + $0x8] sm:$0xff]
        %v697 = vld [vmem:[%s652] sm:$0xff]
        %v698 = vld [vmem:[%s652 + $0x8] sm:$0xff]
        %s699 = sld [smem:[#allocation2 + %s31]]
        %v700 = vstv %s699
        %v701 = vsub.f32 %v697, %v700
        %v702 = vsub.f32 %v698, %v700
        %s703 = sld [smem:[#allocation4 + %s31]]
        %v704 = vstv %s703
        %v705 = vmul.f32 %v701, %v704
        %v706 = vmul.f32 %v702, %v704
        %v707 = vld [vmem:[%s657] sm:$0xff]
        %v708 = vld [vmem:[%s657 + $0x8] sm:$0xff]
        %s709 = sld [smem:[#allocation6 + %s31]]
        %v710 = vstv %s709
        %v711 = vsub.f32 %v707, %v710
        %v712 = vsub.f32 %v708, %v710
        %s713 = sld [smem:[#allocation7 + %s31]]
        %v714 = vstv %s713
        %v715 = vmul.f32 %v711, %v714
        %v716 = vmul.f32 %v712, %v714
        %v717 = vsub.f32 %v705, %v715
        %v718 = vsub.f32 %v706, %v716
        %v719 = vand.u32 2147483647, %v717
        %v720 = vand.u32 2147483647, %v718
        %v721 = vld [vmem:[%s667] sm:$0xff]
        %v722 = vld [vmem:[%s667 + $0x8] sm:$0xff]
        %v723 = vmul.f32 %v719, %v721
        %v724 = vmul.f32 %v720, %v722
        %v725 = vmul.f32 %v723, %v695
        %v726 = vmul.f32 %v724, %v696
        %vm727 = vcmask 130048
        %v728 = vsel %vm727, %v725, 0.0
        %v729 = vsel %vm727, %v726, 0.0
        %v730 = vadd.f32 %v728, %v729
        %731 = vadd.xlane.f32.xlu0 %v730
        %v732 = vpop.xlane.xlu0 %731
        %v733 = vrot.slane %v732, 4
        %v734 = vadd.f32 %v732, %v733
        %v735 = vrot.slane %v734, 2
        %v736 = vadd.f32 %v734, %v735
        %v737 = vrot.slane %v736, 1
        %v738 = vadd.f32 %v736, %v737
        %vm739 = vcmask 0
        %740 = vst.msk [vmem:[%s670] sm:$0x1] %vm739, %v738
        %v741 = vmul.f32 %v695, %v717
        %v742 = vmul.f32 %v696, %v718
        %v743 = vlaneseq
        %v744 = vshrl.u32 %v743, 7
        %v745 = vadd.s32 %v744, 8
        %v746 = vlaneseq
        %v747 = vand.u32 %v746, 127
        %750 = vrot.lane.b32.xlu0 %v741, 127
        %v751 = vpop.permute.xlu0 %750
        %752 = vrot.lane.b32.xlu0 %v742, 127
        %v753 = vpop.permute.xlu0 %752
        %vm756 = vcmask 121856
        %v757 = vsel %vm756, %v751, 0.0
        %v758 = vsel %vm756, %v753, 0.0
        %v759 = vsub.f32 %v757, %v741
        %v760 = vsub.f32 %v758, %v742
        %v761 = vand.u32 2147483647, %v759
        %v762 = vand.u32 2147483647, %v760
        %765 = vrot.lane.b32.xlu0 %v695, 127
        %v766 = vpop.permute.xlu0 %765
        %767 = vrot.lane.b32.xlu0 %v696, 127
        %v768 = vpop.permute.xlu0 %767
        %v771 = vsel %vm756, %v766, 0.0
        %v772 = vsel %vm756, %v768, 0.0
        %v773 = vmul.f32 %v771, %v695
        %v774 = vmul.f32 %v772, %v696
        %v775 = vmul.f32 %v761, %v773
        %v776 = vmul.f32 %v762, %v774
        %vm777 = vcmask 1046528
        %v778 = vrot.slane %v741, 1
        %v779 = vrot.slane %v742, 1
        %v780 = vsel %vm777, %v778, %v779
        %v783 = vsel %vm777, %v779, 0.0
        %v784 = vsub.f32 %v780, %v741
        %v785 = vsub.f32 %v783, %v742
        %v786 = vand.u32 2147483647, %v784
        %v787 = vand.u32 2147483647, %v785
        %v788 = vrot.slane %v695, 1
        %v789 = vrot.slane %v696, 1
        %v790 = vsel %vm777, %v788, %v789
        %v793 = vsel %vm777, %v789, 0.0
        %v794 = vmul.f32 %v790, %v695
        %v795 = vmul.f32 %v793, %v696
        %v796 = vmul.f32 %v786, %v794
        %v797 = vmul.f32 %v787, %v795
        %v798 = vadd.f32 %v775, %v796
        %v799 = vadd.f32 %v776, %v797
        %v800 = vsel %vm727, %v798, 0.0
        %v801 = vsel %vm727, %v799, 0.0
        %v802 = vadd.f32 %v800, %v801
        %803 = vadd.xlane.f32.xlu0 %v802
        %v804 = vpop.xlane.xlu0 %803
        %v805 = vrot.slane %v804, 4
        %v806 = vadd.f32 %v804, %v805
        %v807 = vrot.slane %v806, 2
        %v808 = vadd.f32 %v806, %v807
        %v809 = vrot.slane %v808, 1
        %v810 = vadd.f32 %v808, %v809
        %811 = vst.msk [vmem:[%s673] sm:$0x1] %vm739, %v810
        %v812 = vsel %vm727, %v695, 0.0
        %v813 = vsel %vm727, %v696, 0.0
        %v814 = vadd.f32 %v812, %v813
        %815 = vadd.xlane.f32.xlu0 %v814
        %v816 = vpop.xlane.xlu0 %815
        %v817 = vrot.slane %v816, 4
        %v818 = vadd.f32 %v816, %v817
        %v819 = vrot.slane %v818, 2
        %v820 = vadd.f32 %v818, %v819
        %v821 = vrot.slane %v820, 1
        %v822 = vadd.f32 %v820, %v821
        %823 = vst.msk [vmem:[%s685] sm:$0x1] %vm739, %v822
        %824 = vrot.lane.b32.xlu0 %v741, 126
        %v825 = vpop.permute.xlu0 %824
        %826 = vrot.lane.b32.xlu0 %v742, 126
        %v827 = vpop.permute.xlu0 %826
        %vm830 = vcmask 113664
        %v831 = vsel %vm830, %v825, 0.0
        %v832 = vsel %vm830, %v827, 0.0
        %v833 = vsub.f32 %v831, %v741
        %v834 = vsub.f32 %v832, %v742
        %v835 = vand.u32 2147483647, %v833
        %v836 = vand.u32 2147483647, %v834
        %837 = vrot.lane.b32.xlu0 %v695, 126
        %v838 = vpop.permute.xlu0 %837
        %839 = vrot.lane.b32.xlu0 %v696, 126
        %v840 = vpop.permute.xlu0 %839
        %v843 = vsel %vm830, %v838, 0.0
        %v844 = vsel %vm830, %v840, 0.0
        %v845 = vmul.f32 %v843, %v695
        %v846 = vmul.f32 %v844, %v696
        %v847 = vmul.f32 %v835, %v845
        %v848 = vmul.f32 %v836, %v846
        %vm849 = vcmask 1045504
        %v850 = vrot.slane %v741, 2
        %v851 = vrot.slane %v742, 2
        %v852 = vsel %vm849, %v850, %v851
        %v855 = vsel %vm849, %v851, 0.0
        %v856 = vsub.f32 %v852, %v741
        %v857 = vsub.f32 %v855, %v742
        %v858 = vand.u32 2147483647, %v856
        %v859 = vand.u32 2147483647, %v857
        %v860 = vrot.slane %v695, 2
        %v861 = vrot.slane %v696, 2
        %v862 = vsel %vm849, %v860, %v861
        %v865 = vsel %vm849, %v861, 0.0
        %v866 = vmul.f32 %v862, %v695
        %v867 = vmul.f32 %v865, %v696
        %v868 = vmul.f32 %v858, %v866
        %v869 = vmul.f32 %v859, %v867
        %v870 = vand.u32 %v744, 1
        %v871 = vand.u32 %v745, 1
        %vm872 = vcmp.eq.s32.totalorder %v870, 0
        %vm873 = vcmp.eq.s32.totalorder %v871, 0
        %v874 = vand.u32 %v747, 1
        %vm875 = vcmp.eq.s32.totalorder %v874, 0
        %vm876 = vmand %vm872, %vm875
        %vm877 = vmand %vm873, %vm875
        %v878 = vadd.f32 %v847, %v868
        %v879 = vadd.f32 %v848, %v869
        %v880 = vsel %vm876, %v878, 0.0
        %v881 = vsel %vm877, %v879, 0.0
        %v882 = vsel %vm876, %v695, 0.0
        %v883 = vsel %vm877, %v696, 0.0
        %v884 = vsel %vm727, %v880, 0.0
        %v885 = vsel %vm727, %v881, 0.0
        %v886 = vadd.f32 %v884, %v885
        %887 = vadd.xlane.f32.xlu0 %v886
        %v888 = vpop.xlane.xlu0 %887
        %v889 = vrot.slane %v888, 4
        %v890 = vadd.f32 %v888, %v889
        %v891 = vrot.slane %v890, 2
        %v892 = vadd.f32 %v890, %v891
        %v893 = vrot.slane %v892, 1
        %v894 = vadd.f32 %v892, %v893
        %895 = vst.msk [vmem:[%s676] sm:$0x1] %vm739, %v894
        %v896 = vsel %vm727, %v882, 0.0
        %v897 = vsel %vm727, %v883, 0.0
        %v898 = vadd.f32 %v896, %v897
        %899 = vadd.xlane.f32.xlu0 %v898
        %v900 = vpop.xlane.xlu0 %899
        %v901 = vrot.slane %v900, 4
        %v902 = vadd.f32 %v900, %v901
        %v903 = vrot.slane %v902, 2
        %v904 = vadd.f32 %v902, %v903
        %v905 = vrot.slane %v904, 1
        %v906 = vadd.f32 %v904, %v905
        %907 = vst.msk [vmem:[%s688] sm:$0x1] %vm739, %v906
        %908 = vrot.lane.b32.xlu0 %v741, 124
        %v909 = vpop.permute.xlu0 %908
        %910 = vrot.lane.b32.xlu0 %v742, 124
        %v911 = vpop.permute.xlu0 %910
        %vm914 = vcmask 97280
        %v915 = vsel %vm914, %v909, 0.0
        %v916 = vsel %vm914, %v911, 0.0
        %v917 = vsub.f32 %v915, %v741
        %v918 = vsub.f32 %v916, %v742
        %v919 = vand.u32 2147483647, %v917
        %v920 = vand.u32 2147483647, %v918
        %921 = vrot.lane.b32.xlu0 %v695, 124
        %v922 = vpop.permute.xlu0 %921
        %923 = vrot.lane.b32.xlu0 %v696, 124
        %v924 = vpop.permute.xlu0 %923
        %v927 = vsel %vm914, %v922, 0.0
        %v928 = vsel %vm914, %v924, 0.0
        %v929 = vmul.f32 %v927, %v695
        %v930 = vmul.f32 %v928, %v696
        %v931 = vmul.f32 %v919, %v929
        %v932 = vmul.f32 %v920, %v930
        %vm933 = vcmask 1043456
        %v934 = vrot.slane %v741, 4
        %v935 = vrot.slane %v742, 4
        %v936 = vsel %vm933, %v934, %v935
        %v939 = vsel %vm933, %v935, 0.0
        %v940 = vsub.f32 %v936, %v741
        %v941 = vsub.f32 %v939, %v742
        %v942 = vand.u32 2147483647, %v940
        %v943 = vand.u32 2147483647, %v941
        %v944 = vrot.slane %v695, 4
        %v945 = vrot.slane %v696, 4
        %v946 = vsel %vm933, %v944, %v945
        %v949 = vsel %vm933, %v945, 0.0
        %v950 = vmul.f32 %v946, %v695
        %v951 = vmul.f32 %v949, %v696
        %v952 = vmul.f32 %v942, %v950
        %v953 = vmul.f32 %v943, %v951
        %v954 = vand.u32 %v744, 3
        %v955 = vand.u32 %v745, 3
        %vm956 = vcmp.eq.s32.totalorder %v954, 0
        %vm957 = vcmp.eq.s32.totalorder %v955, 0
        %v958 = vand.u32 %v747, 3
        %vm959 = vcmp.eq.s32.totalorder %v958, 0
        %vm960 = vmand %vm956, %vm959
        %vm961 = vmand %vm957, %vm959
        %v962 = vadd.f32 %v931, %v952
        %v963 = vadd.f32 %v932, %v953
        %v964 = vsel %vm960, %v962, 0.0
        %v965 = vsel %vm961, %v963, 0.0
        %v966 = vsel %vm960, %v695, 0.0
        %v967 = vsel %vm961, %v696, 0.0
        %v968 = vsel %vm727, %v964, 0.0
        %v969 = vsel %vm727, %v965, 0.0
        %v970 = vadd.f32 %v968, %v969
        %971 = vadd.xlane.f32.xlu0 %v970
        %v972 = vpop.xlane.xlu0 %971
        %v973 = vrot.slane %v972, 4
        %v974 = vadd.f32 %v972, %v973
        %v975 = vrot.slane %v974, 2
        %v976 = vadd.f32 %v974, %v975
        %v977 = vrot.slane %v976, 1
        %v978 = vadd.f32 %v976, %v977
        %979 = vst.msk [vmem:[%s679] sm:$0x1] %vm739, %v978
        %v980 = vsel %vm727, %v966, 0.0
        %v981 = vsel %vm727, %v967, 0.0
        %v982 = vadd.f32 %v980, %v981
        %983 = vadd.xlane.f32.xlu0 %v982
        %v984 = vpop.xlane.xlu0 %983
        %v985 = vrot.slane %v984, 4
        %v986 = vadd.f32 %v984, %v985
        %v987 = vrot.slane %v986, 2
        %v988 = vadd.f32 %v986, %v987
        %v989 = vrot.slane %v988, 1
        %v990 = vadd.f32 %v988, %v989
        %991 = vst.msk [vmem:[%s691] sm:$0x1] %vm739, %v990
        %992 = vrot.lane.b32.xlu0 %v741, 120
        %v993 = vpop.permute.xlu0 %992
        %994 = vrot.lane.b32.xlu0 %v742, 120
        %v995 = vpop.permute.xlu0 %994
        %vm998 = vcmask 64512
        %v999 = vsel %vm998, %v993, 0.0
        %v1000 = vsel %vm998, %v995, 0.0
        %v1001 = vsub.f32 %v999, %v741
        %v1002 = vsub.f32 %v1000, %v742
        %v1003 = vand.u32 2147483647, %v1001
        %v1004 = vand.u32 2147483647, %v1002
        %1005 = vrot.lane.b32.xlu0 %v695, 120
        %v1006 = vpop.permute.xlu0 %1005
        %1007 = vrot.lane.b32.xlu0 %v696, 120
        %v1008 = vpop.permute.xlu0 %1007
        %v1011 = vsel %vm998, %v1006, 0.0
        %v1012 = vsel %vm998, %v1008, 0.0
        %v1013 = vmul.f32 %v1011, %v695
        %v1014 = vmul.f32 %v1012, %v696
        %v1015 = vmul.f32 %v1003, %v1013
        %v1016 = vmul.f32 %v1004, %v1014
        %v1017 = vsub.f32 %v742, %v741
        %v1018 = vsub.f32 0.0, %v742
        %v1019 = vand.u32 2147483647, %v1017
        %v1020 = vand.u32 2147483647, %v1018
        %v1021 = vmul.f32 %v696, %v695
        %v1022 = vmul.f32 %v696, 0.0
        %v1023 = vmul.f32 %v1019, %v1021
        %v1024 = vmul.f32 %v1020, %v1022
        %v1025 = vand.u32 %v744, 7
        %v1026 = vand.u32 %v745, 7
        %vm1027 = vcmp.eq.s32.totalorder %v1025, 0
        %vm1028 = vcmp.eq.s32.totalorder %v1026, 0
        %v1029 = vand.u32 %v747, 7
        %vm1030 = vcmp.eq.s32.totalorder %v1029, 0
        %vm1031 = vmand %vm1027, %vm1030
        %vm1032 = vmand %vm1028, %vm1030
        %v1033 = vadd.f32 %v1015, %v1023
        %v1034 = vadd.f32 %v1016, %v1024
        %v1035 = vsel %vm1031, %v1033, 0.0
        %v1036 = vsel %vm1032, %v1034, 0.0
        %v1037 = vsel %vm1031, %v695, 0.0
        %v1038 = vsel %vm1032, %v696, 0.0
        %v1039 = vsel %vm727, %v1035, 0.0
        %v1040 = vsel %vm727, %v1036, 0.0
        %v1041 = vadd.f32 %v1039, %v1040
        %1042 = vadd.xlane.f32.xlu0 %v1041
        %v1043 = vpop.xlane.xlu0 %1042
        %v1044 = vrot.slane %v1043, 4
        %v1045 = vadd.f32 %v1043, %v1044
        %v1046 = vrot.slane %v1045, 2
        %v1047 = vadd.f32 %v1045, %v1046
        %v1048 = vrot.slane %v1047, 1
        %v1049 = vadd.f32 %v1047, %v1048
        %1050 = vst.msk [vmem:[%s682] sm:$0x1] %vm739, %v1049
        %v1051 = vsel %vm727, %v1037, 0.0
        %v1052 = vsel %vm727, %v1038, 0.0
        %v1053 = vadd.f32 %v1051, %v1052
        %1054 = vadd.xlane.f32.xlu0 %v1053
        %v1055 = vpop.xlane.xlu0 %1054
        %v1056 = vrot.slane %v1055, 4
        %v1057 = vadd.f32 %v1055, %v1056
        %v1058 = vrot.slane %v1057, 2
        %v1059 = vadd.f32 %v1057, %v1058
        %v1060 = vrot.slane %v1059, 1
        %v1061 = vadd.f32 %v1059, %v1060
        %1062 = vst.msk [vmem:[%s694] sm:$0x1] %vm739, %v1061
        %p1063 = scmp.lt.s32.totalorder %s31, 1
        %s1064 = scalar_select %p1063, %s31, 1
        %s1065 = scalar_lea.vmem %s8, %s1064
        %p1066 = scmp.lt.s32.totalorder %s31, 1
        %s1067 = scalar_select %p1066, %s31, 1
        %s1068 = scalar_lea.vmem %s9, %s1067
        %p1069 = scmp.lt.s32.totalorder %s31, 1
        %s1070 = scalar_select %p1069, %s31, 1
        %s1071 = scalar_lea.vmem %s10, %s1070
        %p1072 = scmp.lt.s32.totalorder %s31, 1
        %s1073 = scalar_select %p1072, %s31, 1
        %s1074 = scalar_lea.vmem %s11, %s1073
        %p1075 = scmp.lt.s32.totalorder %s31, 1
        %s1076 = scalar_select %p1075, %s31, 1
        %s1077 = scalar_lea.vmem %s12, %s1076
        %p1078 = scmp.lt.s32.totalorder %s31, 1
        %s1079 = scalar_select %p1078, %s31, 1
        %s1080 = scalar_lea.vmem %s13, %s1079
        %p1081 = scmp.lt.s32.totalorder %s31, 1
        %s1082 = scalar_select %p1081, %s31, 1
        %s1083 = scalar_lea.vmem %s14, %s1082
        %p1084 = scmp.lt.s32.totalorder %s31, 1
        %s1085 = scalar_select %p1084, %s31, 1
        %s1086 = scalar_lea.vmem %s15, %s1085
        %p1087 = scmp.lt.s32.totalorder %s31, 1
        %s1088 = scalar_select %p1087, %s31, 1
        %s1089 = scalar_lea.vmem %s16, %s1088
        // Predicated region
        $region69: #{weighted_affine_loss.3} parent=51 // pred_check
          %p1090 = pneg %p237
        $region70: #{weighted_affine_loss.3} parent=51 // pred_check_branch
          %1092 = sbr.rel (%p1090) target = $region72
        $region71: #{weighted_affine_loss.3} parent=51 // pred_region
          _
        $region72: #{weighted_affine_loss.3} parent=51 // pred_fallthru
          _
        // Predicated region
        $region73: #{weighted_affine_loss.3} parent=51 // pred_check
          %p1093 = pneg %p263
        $region74: #{weighted_affine_loss.3} parent=51 // pred_check_branch
          %1095 = sbr.rel (%p1093) target = $region76
        $region75: #{weighted_affine_loss.3} parent=51 // pred_region
          _
        $region76: #{weighted_affine_loss.3} parent=51 // pred_fallthru
          _
        // Predicated region
        $region77: #{weighted_affine_loss.3} parent=51 // pred_check
          %p1096 = pneg %p289
        $region78: #{weighted_affine_loss.3} parent=51 // pred_check_branch
          %1098 = sbr.rel (%p1096) target = $region80
        $region79: #{weighted_affine_loss.3} parent=51 // pred_region
          _
        $region80: #{weighted_affine_loss.3} parent=51 // pred_fallthru
          _
        // Predicated region
        $region81: #{weighted_affine_loss.3} parent=51 // pred_check
          %p1099 = pneg %p315
        $region82: #{weighted_affine_loss.3} parent=51 // pred_check_branch
          %1101 = sbr.rel (%p1099) target = $region84
        $region83: #{weighted_affine_loss.3} parent=51 // pred_region
          _
        $region84: #{weighted_affine_loss.3} parent=51 // pred_fallthru
          _
        // Predicated region
        $region85: #{weighted_affine_loss.3} parent=51 // pred_check
          %p1102 = pneg %p341
        $region86: #{weighted_affine_loss.3} parent=51 // pred_check_branch
          %1104 = sbr.rel (%p1102) target = $region88
        $region87: #{weighted_affine_loss.3} parent=51 // pred_region
          _
        $region88: #{weighted_affine_loss.3} parent=51 // pred_fallthru
          _
        // Predicated region
        $region89: #{weighted_affine_loss.3} parent=51 // pred_check
          %p1105 = pneg %p367
        $region90: #{weighted_affine_loss.3} parent=51 // pred_check_branch
          %1107 = sbr.rel (%p1105) target = $region92
        $region91: #{weighted_affine_loss.3} parent=51 // pred_region
          _
        $region92: #{weighted_affine_loss.3} parent=51 // pred_fallthru
          _
        // Predicated region
        $region93: #{weighted_affine_loss.3} parent=51 // pred_check
          %p1108 = pneg %p393
        $region94: #{weighted_affine_loss.3} parent=51 // pred_check_branch
          %1110 = sbr.rel (%p1108) target = $region96
        $region95: #{weighted_affine_loss.3} parent=51 // pred_region
          _
        $region96: #{weighted_affine_loss.3} parent=51 // pred_fallthru
          _
        // Predicated region
        $region97: #{weighted_affine_loss.3} parent=51 // pred_check
          %p1111 = pneg %p419
        $region98: #{weighted_affine_loss.3} parent=51 // pred_check_branch
          %1113 = sbr.rel (%p1111) target = $region100
        $region99: #{weighted_affine_loss.3} parent=51 // pred_region
          _
        $region100: #{weighted_affine_loss.3} parent=51 // pred_fallthru
          _
        // Predicated region
        $region101: #{weighted_affine_loss.3} parent=51 // pred_check
          %p1114 = pneg %p445
        $region102: #{weighted_affine_loss.3} parent=51 // pred_check_branch
          %1116 = sbr.rel (%p1114) target = $region104
        $region103: #{weighted_affine_loss.3} parent=51 // pred_region
          _
        $region104: #{weighted_affine_loss.3} parent=51 // pred_fallthru
          _
      $region52: #{weighted_affine_loss.3} parent=5 // pred_fallthru
        _
      %p1117 = scmp.le.s32.totalorder 2, %s26
      // Predicated region
      $region105: #{weighted_affine_loss.3} parent=5 // pred_check
        %p1118 = pneg %p1117
      $region106: #{weighted_affine_loss.3} parent=5 // pred_check_branch
        %1120 = sbr.rel (%p1118) target = $region108
      $region107: #{weighted_affine_loss.3} parent=5 // pred_region
        %s1121 = ssub.s32 %s26, 2
        // Predicated region
        $region109: #{weighted_affine_loss.3} parent=107 // pred_check
          %p1122 = pneg %p243
        $region110: #{weighted_affine_loss.3} parent=107 // pred_check_branch
          %1124 = sbr.rel (%p1122) target = $region112
        $region111: #{weighted_affine_loss.3} parent=107 // pred_region
          %p1125 = scmp.lt.s32.totalorder %s32, 1
          %s1126 = scalar_select %p1125, %s32, 1
          %s1127 = scalar_lea.vmem %s8, %s1126
        $region112: #{weighted_affine_loss.3} parent=107 // pred_fallthru
          _
        // Predicated region
        $region113: #{weighted_affine_loss.3} parent=107 // pred_check
          %p1128 = pneg %p269
        $region114: #{weighted_affine_loss.3} parent=107 // pred_check_branch
          %1130 = sbr.rel (%p1128) target = $region116
        $region115: #{weighted_affine_loss.3} parent=107 // pred_region
          %p1131 = scmp.lt.s32.totalorder %s32, 1
          %s1132 = scalar_select %p1131, %s32, 1
          %s1133 = scalar_lea.vmem %s9, %s1132
        $region116: #{weighted_affine_loss.3} parent=107 // pred_fallthru
          _
        // Predicated region
        $region117: #{weighted_affine_loss.3} parent=107 // pred_check
          %p1134 = pneg %p295
        $region118: #{weighted_affine_loss.3} parent=107 // pred_check_branch
          %1136 = sbr.rel (%p1134) target = $region120
        $region119: #{weighted_affine_loss.3} parent=107 // pred_region
          %p1137 = scmp.lt.s32.totalorder %s32, 1
          %s1138 = scalar_select %p1137, %s32, 1
          %s1139 = scalar_lea.vmem %s10, %s1138
        $region120: #{weighted_affine_loss.3} parent=107 // pred_fallthru
          _
        // Predicated region
        $region121: #{weighted_affine_loss.3} parent=107 // pred_check
          %p1140 = pneg %p321
        $region122: #{weighted_affine_loss.3} parent=107 // pred_check_branch
          %1142 = sbr.rel (%p1140) target = $region124
        $region123: #{weighted_affine_loss.3} parent=107 // pred_region
          %p1143 = scmp.lt.s32.totalorder %s32, 1
          %s1144 = scalar_select %p1143, %s32, 1
          %s1145 = scalar_lea.vmem %s11, %s1144
        $region124: #{weighted_affine_loss.3} parent=107 // pred_fallthru
          _
        // Predicated region
        $region125: #{weighted_affine_loss.3} parent=107 // pred_check
          %p1146 = pneg %p347
        $region126: #{weighted_affine_loss.3} parent=107 // pred_check_branch
          %1148 = sbr.rel (%p1146) target = $region128
        $region127: #{weighted_affine_loss.3} parent=107 // pred_region
          %p1149 = scmp.lt.s32.totalorder %s32, 1
          %s1150 = scalar_select %p1149, %s32, 1
          %s1151 = scalar_lea.vmem %s12, %s1150
        $region128: #{weighted_affine_loss.3} parent=107 // pred_fallthru
          _
        // Predicated region
        $region129: #{weighted_affine_loss.3} parent=107 // pred_check
          %p1152 = pneg %p373
        $region130: #{weighted_affine_loss.3} parent=107 // pred_check_branch
          %1154 = sbr.rel (%p1152) target = $region132
        $region131: #{weighted_affine_loss.3} parent=107 // pred_region
          %p1155 = scmp.lt.s32.totalorder %s32, 1
          %s1156 = scalar_select %p1155, %s32, 1
          %s1157 = scalar_lea.vmem %s13, %s1156
        $region132: #{weighted_affine_loss.3} parent=107 // pred_fallthru
          _
        // Predicated region
        $region133: #{weighted_affine_loss.3} parent=107 // pred_check
          %p1158 = pneg %p399
        $region134: #{weighted_affine_loss.3} parent=107 // pred_check_branch
          %1160 = sbr.rel (%p1158) target = $region136
        $region135: #{weighted_affine_loss.3} parent=107 // pred_region
          %p1161 = scmp.lt.s32.totalorder %s32, 1
          %s1162 = scalar_select %p1161, %s32, 1
          %s1163 = scalar_lea.vmem %s14, %s1162
        $region136: #{weighted_affine_loss.3} parent=107 // pred_fallthru
          _
        // Predicated region
        $region137: #{weighted_affine_loss.3} parent=107 // pred_check
          %p1164 = pneg %p425
        $region138: #{weighted_affine_loss.3} parent=107 // pred_check_branch
          %1166 = sbr.rel (%p1164) target = $region140
        $region139: #{weighted_affine_loss.3} parent=107 // pred_region
          %p1167 = scmp.lt.s32.totalorder %s32, 1
          %s1168 = scalar_select %p1167, %s32, 1
          %s1169 = scalar_lea.vmem %s15, %s1168
        $region140: #{weighted_affine_loss.3} parent=107 // pred_fallthru
          _
        // Predicated region
        $region141: #{weighted_affine_loss.3} parent=107 // pred_check
          %p1170 = pneg %p451
        $region142: #{weighted_affine_loss.3} parent=107 // pred_check_branch
          %1172 = sbr.rel (%p1170) target = $region144
        $region143: #{weighted_affine_loss.3} parent=107 // pred_region
          %p1173 = scmp.lt.s32.totalorder %s32, 1
          %s1174 = scalar_select %p1173, %s32, 1
          %s1175 = scalar_lea.vmem %s16, %s1174
        $region144: #{weighted_affine_loss.3} parent=107 // pred_fallthru
          _
      $region108: #{weighted_affine_loss.3} parent=5 // pred_fallthru
        _
    $region6: #{weighted_affine_loss.3} parent=1 // loop_footer
      %s30 = sadd.s32 1, %s26
    $region7: #{weighted_affine_loss.3} parent=1 // loop_footer_branch
      %25 = sbr.rel target = $region3
    $region8: #{weighted_affine_loss.3} parent=1 // loop_exit
      _
    %1176 = vsyncpa [#allocation3], 1
    %s1177 = scalar_lea.sflag [#allocation3], 1
    %1178 = vsyncpa %s1177, 1
    %1179 = vsyncpa [#allocation5], 1
    %1180 = vsyncpa [#allocation8], 1

</llo_original>
